<compile_context>
chip_gen: v6e
topology: v6e:2x2x1
jax: 0.10.0
libtpu: 0.0.40
codegen_flags: <defaults>
</compile_context>

<pallas_src>
import functools

import jax
import jax.numpy as jnp
import numpy as np
from jax.experimental import pallas as pl
from jax.experimental.pallas import tpu as pltpu

KSIZE = 5          # Conv1d kernel size in the reference module
BN_EPS = 1e-5      # nn.BatchNorm1d default eps


# --------------------------- fused Pallas kernel ------------------------------

def fused_cnn_kernel(x_ref, wc1_ref, s1_ref, t1_ref, wc2_ref, s2_ref, t2_ref,
                     w1_ref, b1_ref, w2_ref, b2_ref, w3_ref, b3_ref,
                     o_ref,
                     col1_ref, y1_ref, p1_ref, col2_ref, y2_ref, p2_ref, flat_ref,
                     *, tb, seq, emb_dim, ksize, l2, l4):
    """Entire CNN forward for one batch tile of `tb` elements.

    x_ref:   (tb*seq, emb_dim)  embedded tokens, batch elements stacked on rows
    wc1_ref: (K*emb_dim, 64)    conv1 weight in im2col layout (k-major, ci-minor)
    wc2_ref: (K*64, 128)        conv2 weight in im2col layout
    s*/t*:   (1, C)             folded BatchNorm scale / shift (conv bias folded in)
    w1_ref:  (128*l4, 64)       fc1 weight, rows pre-permuted to channels-last order
    o_ref:   (tb, 2)            log-probabilities
    """
    c1, c2 = 64, 128

    # ---- conv block 1: batched im2col (VMEM scratch) -> ONE MXU matmul ------
    # even/odd conv positions are stacked along M so MaxPool1d(2,2) later is a
    # max of two contiguous row blocks.
    for b in range(tb):
        for par in range(2):                       # parity of the conv position
            r0 = (2 * b + par) * l2
            for k in range(ksize):
                col1_ref[r0:r0 + l2, k * emb_dim:(k + 1) * emb_dim] = (
                    x_ref[pl.ds(b * seq + k + par, l2, stride=2), :])
    y1_ref[...] = jnp.maximum(                      # Conv + BN + ReLU
        jnp.dot(col1_ref[...], wc1_ref[...], preferred_element_type=jnp.float32)
        * s1_ref[...] + t1_ref[...], 0.0)
    for b in range(tb):                             # MaxPool1d(2, 2)
        e0 = 2 * b * l2
        p1_ref[b * l2:(b + 1) * l2, :] = jnp.maximum(
            y1_ref[e0:e0 + l2, :], y1_ref[e0 + l2:e0 + 2 * l2, :])

    # ---- conv block 2: same scheme ------------------------------------------
    for b in range(tb):
        for par in range(2):
            r0 = (2 * b + par) * l4
            for k in range(ksize):
                col2_ref[r0:r0 + l4, k * c1:(k + 1) * c1] = (
                    p1_ref[pl.ds(b * l2 + k + par, l4, stride=2), :])
    y2_ref[...] = jnp.maximum(
        jnp.dot(col2_ref[...], wc2_ref[...], preferred_element_type=jnp.float32)
        * s2_ref[...] + t2_ref[...], 0.0)
    for b in range(tb):
        e0 = 2 * b * l4
        p2_ref[b * l4:(b + 1) * l4, :] = jnp.maximum(
            y2_ref[e0:e0 + l4, :], y2_ref[e0 + l4:e0 + 2 * l4, :])

    # ---- flatten: channels-last lane packing (w1 rows permuted at init) -----
    for b in range(tb):
        for l in range(l4):
            flat_ref[b:b + 1, l * c2:(l + 1) * c2] = (
                p2_ref[b * l4 + l:b * l4 + l + 1, :])

    # ---- MLP head (dropout = identity in eval) + LogSoftmax(dim=1) ----------
    h = jnp.maximum(jnp.dot(flat_ref[...], w1_ref[...],
                            preferred_element_type=jnp.float32) + b1_ref[...], 0.0)
    h = jnp.maximum(jnp.dot(h, w2_ref[...],
                            preferred_element_type=jnp.float32) + b2_ref[...], 0.0)
    logits = jnp.dot(h, w3_ref[...],
                     preferred_element_type=jnp.float32) + b3_ref[...]
    z = logits - jnp.max(logits, axis=-1, keepdims=True)
    o_ref[...] = z - jnp.log(jnp.sum(jnp.exp(z), axis=-1, keepdims=True))


# --------------------------- wrapper ------------------------------------------

def _batch_tile(batch):
    """Largest convenient batch tile (<= 8 elements per grid step)."""
    if batch <= 8:
        return batch
    for tb in (8, 4, 2, 1):
        if batch % tb == 0:
            return tb
    return 1


def cnn_forward(tokens, p):
    """tokens: (B, S) int32 -> (B, 2) log-probabilities."""
    B, S = tokens.shape
    E = p["emb"].shape[1]
    K = KSIZE
    L1 = S - K + 1          # conv1 output length
    L2 = L1 // 2            # pool1 output length
    L3 = L2 - K + 1         # conv2 output length
    L4 = L3 // 2            # pool2 output length
    feat = 128 * L4
    TB = _batch_tile(B)
    n_tiles = B // TB

    # Embedding lookup stays as a single XLA gather, already flattened to rows.
    emb_flat = p["emb"][tokens.reshape(-1)]          # (B*S, E)

    kernel = functools.partial(fused_cnn_kernel, tb=TB, seq=S, emb_dim=E,
                               ksize=K, l2=L2, l4=L4)

    def full(shape):
        return pl.BlockSpec(shape, lambda t: (0, 0))

    return pl.pallas_call(
        kernel,
        out_shape=jax.ShapeDtypeStruct((B, 2), jnp.float32),
        grid=(n_tiles,),
        in_specs=[
            pl.BlockSpec((TB * S, E), lambda t: (t, 0)),     # embedded batch tile
            full((K * E, 64)), full((1, 64)), full((1, 64)),   # conv1 w / BN
            full((K * 64, 128)), full((1, 128)), full((1, 128)),  # conv2 w / BN
            full((feat, 64)), full((1, 64)),                   # fc1 (permuted) / b1
            full((64, 32)), full((1, 32)),                     # fc2 / b2
            full((32, 2)), full((1, 2)),                       # fc3 / b3
        ],
        out_specs=pl.BlockSpec((TB, 2), lambda t: (t, 0)),
        scratch_shapes=[
            pltpu.VMEM((2 * TB * L2, K * E), jnp.float32),   # conv1 im2col
            pltpu.VMEM((2 * TB * L2, 64), jnp.float32),      # conv1 post BN/ReLU
            pltpu.VMEM((TB * L2, 64), jnp.float32),          # pooled conv1
            pltpu.VMEM((2 * TB * L4, K * 64), jnp.float32),  # conv2 im2col
            pltpu.VMEM((2 * TB * L4, 128), jnp.float32),     # conv2 post BN/ReLU
            pltpu.VMEM((TB * L4, 128), jnp.float32),         # pooled conv2
            pltpu.VMEM((TB, feat), jnp.float32),             # flattened features
        ],
        compiler_params=pltpu.CompilerParams(dimension_semantics=("parallel",)),
    )(emb_flat, p["wc1f"], p["scale1"], p["shift1"],
      p["wc2f"], p["scale2"], p["shift2"],
      p["w1k"], p["b1"], p["w2"], p["b2"], p["w3"], p["b3"])


# --------------------------- params & reference -------------------------------

def init_params(key, vocab_size, emb_dim, seq_len):
    ks = jax.random.split(key, 20)
    L1 = seq_len - KSIZE + 1
    L2 = L1 // 2
    L3 = L2 - KSIZE + 1
    L4 = L3 // 2
    feat = 128 * L4   # the original module hard-codes 128*99 for its seq_len

    def bn_fold(kg, kb, km, kv, kbias, c):
        gamma = 1.0 + 0.1 * jax.random.normal(kg, (c,), jnp.float32)
        beta = 0.1 * jax.random.normal(kb, (c,), jnp.float32)
        mean = 0.1 * jax.random.normal(km, (c,), jnp.float32)
        var = 0.9 + 0.1 * jnp.abs(jax.random.normal(kv, (c,), jnp.float32))
        bias = 0.1 * jax.random.normal(kbias, (c,), jnp.float32)   # conv bias
        scale = gamma / jnp.sqrt(var + BN_EPS)
        shift = beta + scale * (bias - mean)
        return scale.reshape(1, c), shift.reshape(1, c)

    scale1, shift1 = bn_fold(ks[3], ks[4], ks[5], ks[6], ks[2], 64)
    scale2, shift2 = bn_fold(ks[9], ks[10], ks[11], ks[12], ks[8], 128)

    p = {
        "emb": 0.5 * jax.random.normal(ks[0], (vocab_size, emb_dim), jnp.float32),
        "wc1": 0.1 * jax.random.normal(ks[1], (KSIZE, emb_dim, 64), jnp.float32),
        "scale1": scale1, "shift1": shift1,
        "wc2": 0.1 * jax.random.normal(ks[7], (KSIZE, 64, 128), jnp.float32),
        "scale2": scale2, "shift2": shift2,
        "w1": (1.0 / np.sqrt(feat)) * jax.random.normal(ks[13], (feat, 64), jnp.float32),
        "b1": 0.1 * jax.random.normal(ks[14], (1, 64), jnp.float32),
        "w2": 0.1 * jax.random.normal(ks[15], (64, 32), jnp.float32),
        "b2": 0.1 * jax.random.normal(ks[16], (1, 32), jnp.float32),
        "w3": 0.2 * jax.random.normal(ks[17], (32, 2), jnp.float32),
        "b3": 0.1 * jax.random.normal(ks[18], (1, 2), jnp.float32),
    }
    # --- one-time offline weight re-layouts for the fused kernel -------------
    # Conv weights in im2col layout (row = k*C_in + ci).
    p["wc1f"] = p["wc1"].reshape(KSIZE * emb_dim, 64)
    p["wc2f"] = p["wc2"].reshape(KSIZE * 64, 128)
    # fc1 rows permuted from NCW-flatten order (c*L4 + l) to channels-last
    # flatten order (l*128 + c): kills the XLA transpose before Flatten.
    p["w1k"] = jnp.transpose(p["w1"].reshape(128, L4, 64), (1, 0, 2)).reshape(feat, 64)
    return p


def reference_forward(tokens, p):
    """Pure-JAX reference with the same (eval-mode) semantics."""
    hi = jax.lax.Precision.HIGHEST

    def block(x, w, scale, shift):
        B, L_in, _ = x.shape
        K, _, C_out = w.shape
        L_out = L_in - K + 1
        conv = jnp.zeros((B, L_out, C_out), jnp.float32)
        for k in range(K):
            conv = conv + jnp.einsum("blc,cd->bld", x[:, k:k + L_out, :], w[k],
                                     precision=hi)
        y = jnp.maximum(conv * scale + shift, 0.0)
        L_pool = L_out // 2
        y = y[:, :2 * L_pool, :].reshape(B, L_pool, 2, C_out)
        return jnp.max(y, axis=2)

    emb = p["emb"][tokens]
    h = block(emb, p["wc1"], p["scale1"], p["shift1"])
    h = block(h, p["wc2"], p["scale2"], p["shift2"])
    flat = jnp.transpose(h, (0, 2, 1)).reshape(h.shape[0], -1)
    h1 = jnp.maximum(jnp.dot(flat, p["w1"], precision=hi) + p["b1"], 0.0)
    h2 = jnp.maximum(jnp.dot(h1, p["w2"], precision=hi) + p["b2"], 0.0)
    logits = jnp.dot(h2, p["w3"], precision=hi) + p["b3"]
    return jax.nn.log_softmax(logits, axis=-1)


# --------------------------- main ---------------------------------------------

if __name__ == "__main__":
    BATCH = 2
    VOCAB = 50
    EMB_DIM = 16
    SEQ_LEN = 24   # small; original module implies SEQ_LEN such that 128*L4 == 128*99

    key = jax.random.PRNGKey(0)
    k_param, k_tok = jax.random.split(key)
    params = init_params(k_param, VOCAB, EMB_DIM, SEQ_LEN)
    tokens = jax.random.randint(k_tok, (BATCH, SEQ_LEN), 0, VOCAB, dtype=jnp.int32)

    out = jax.jit(cnn_forward)(tokens, params)
    out = jax.block_until_ready(out)

    ref = reference_forward(tokens, params)
    np.testing.assert_allclose(np.asarray(out), np.asarray(ref), atol=2e-2, rtol=2e-2)
    assert out.shape == (BATCH, 2) and out.dtype == jnp.float32

    print("KERNEL_OK")
</pallas_src>

<mosaic_0001>
module attributes {stable_mosaic.version = 11 : i64} {
  func.func @fused_cnn_kernel(%arg0: i32, %arg1: memref<48x16xf32, #tpu.memory_space<vmem>>, %arg2: memref<80x64xf32, #tpu.memory_space<vmem>>, %arg3: memref<1x64xf32, #tpu.memory_space<vmem>>, %arg4: memref<1x64xf32, #tpu.memory_space<vmem>>, %arg5: memref<320x128xf32, #tpu.memory_space<vmem>>, %arg6: memref<1x128xf32, #tpu.memory_space<vmem>>, %arg7: memref<1x128xf32, #tpu.memory_space<vmem>>, %arg8: memref<384x64xf32, #tpu.memory_space<vmem>>, %arg9: memref<1x64xf32, #tpu.memory_space<vmem>>, %arg10: memref<64x32xf32, #tpu.memory_space<vmem>>, %arg11: memref<1x32xf32, #tpu.memory_space<vmem>>, %arg12: memref<32x2xf32, #tpu.memory_space<vmem>>, %arg13: memref<1x2xf32, #tpu.memory_space<vmem>>, %arg14: memref<2x2xf32, #tpu.memory_space<vmem>>, %arg15: memref<40x80xf32, #tpu.memory_space<vmem>>, %arg16: memref<40x64xf32, #tpu.memory_space<vmem>>, %arg17: memref<20x64xf32, #tpu.memory_space<vmem>>, %arg18: memref<12x320xf32, #tpu.memory_space<vmem>>, %arg19: memref<12x128xf32, #tpu.memory_space<vmem>>, %arg20: memref<6x128xf32, #tpu.memory_space<vmem>>, %arg21: memref<2x384xf32, #tpu.memory_space<vmem>>) attributes {dimension_semantics = [#tpu.dimension_semantics<parallel>], iteration_bounds = array<i64: 1>, scalar_prefetch = 0 : i64, scratch_operands = 7 : i64, tpu.core_type = #tpu.core_type<tc>, window_params = [{transform_indices = @transform_0, window_bounds = array<i64: 48, 16>}, {pipeline_mode = #tpu.pipeline_mode<synchronous>, transform_indices = @transform_1, window_bounds = array<i64: 80, 64>}, {pipeline_mode = #tpu.pipeline_mode<synchronous>, transform_indices = @transform_2, window_bounds = array<i64: 1, 64>}, {pipeline_mode = #tpu.pipeline_mode<synchronous>, transform_indices = @transform_3, window_bounds = array<i64: 1, 64>}, {pipeline_mode = #tpu.pipeline_mode<synchronous>, transform_indices = @transform_4, window_bounds = array<i64: 320, 128>}, {pipeline_mode = #tpu.pipeline_mode<synchronous>, transform_indices = @transform_5, window_bounds = array<i64: 1, 128>}, {pipeline_mode = #tpu.pipeline_mode<synchronous>, transform_indices = @transform_6, window_bounds = array<i64: 1, 128>}, {pipeline_mode = #tpu.pipeline_mode<synchronous>, transform_indices = @transform_7, window_bounds = array<i64: 384, 64>}, {pipeline_mode = #tpu.pipeline_mode<synchronous>, transform_indices = @transform_8, window_bounds = array<i64: 1, 64>}, {pipeline_mode = #tpu.pipeline_mode<synchronous>, transform_indices = @transform_9, window_bounds = array<i64: 64, 32>}, {pipeline_mode = #tpu.pipeline_mode<synchronous>, transform_indices = @transform_10, window_bounds = array<i64: 1, 32>}, {pipeline_mode = #tpu.pipeline_mode<synchronous>, transform_indices = @transform_11, window_bounds = array<i64: 32, 2>}, {pipeline_mode = #tpu.pipeline_mode<synchronous>, transform_indices = @transform_12, window_bounds = array<i64: 1, 2>}, {transform_indices = @transform_13, window_bounds = array<i64: 2, 2>}]} {
    %c0 = arith.constant 0 : index
    %c0_0 = arith.constant 0 : index
    %0 = tpu.strided_load %arg1[%c0, %c0_0] {strides = array<i32: 2, 1>} : memref<48x16xf32, #tpu.memory_space<vmem>>, vector<10x16xf32>
    %c0_1 = arith.constant 0 : index
    %c0_2 = arith.constant 0 : index
    %1 = vector.load %arg15[%c0_1, %c0_2] : memref<40x80xf32, #tpu.memory_space<vmem>>, vector<10x16xf32>
    tpu.vector_store %arg15[%c0_1, %c0_2], %0 {strides = array<i32>} : memref<40x80xf32, #tpu.memory_space<vmem>>, vector<10x16xf32>,
    %c1 = arith.constant 1 : index
    %c0_3 = arith.constant 0 : index
    %2 = tpu.strided_load %arg1[%c1, %c0_3] {strides = array<i32: 2, 1>} : memref<48x16xf32, #tpu.memory_space<vmem>>, vector<10x16xf32>
    %c0_4 = arith.constant 0 : index
    %c16 = arith.constant 16 : index
    %3 = vector.load %arg15[%c0_4, %c16] : memref<40x80xf32, #tpu.memory_space<vmem>>, vector<10x16xf32>
    tpu.vector_store %arg15[%c0_4, %c16], %2 {strides = array<i32>} : memref<40x80xf32, #tpu.memory_space<vmem>>, vector<10x16xf32>,
    %c2 = arith.constant 2 : index
    %c0_5 = arith.constant 0 : index
    %4 = tpu.strided_load %arg1[%c2, %c0_5] {strides = array<i32: 2, 1>} : memref<48x16xf32, #tpu.memory_space<vmem>>, vector<10x16xf32>
    %c0_6 = arith.constant 0 : index
    %c32 = arith.constant 32 : index
    %5 = vector.load %arg15[%c0_6, %c32] : memref<40x80xf32, #tpu.memory_space<vmem>>, vector<10x16xf32>
    tpu.vector_store %arg15[%c0_6, %c32], %4 {strides = array<i32>} : memref<40x80xf32, #tpu.memory_space<vmem>>, vector<10x16xf32>,
    %c3 = arith.constant 3 : index
    %c0_7 = arith.constant 0 : index
    %6 = tpu.strided_load %arg1[%c3, %c0_7] {strides = array<i32: 2, 1>} : memref<48x16xf32, #tpu.memory_space<vmem>>, vector<10x16xf32>
    %c0_8 = arith.constant 0 : index
    %c48 = arith.constant 48 : index
    %7 = vector.load %arg15[%c0_8, %c48] : memref<40x80xf32, #tpu.memory_space<vmem>>, vector<10x16xf32>
    tpu.vector_store %arg15[%c0_8, %c48], %6 {strides = array<i32>} : memref<40x80xf32, #tpu.memory_space<vmem>>, vector<10x16xf32>,
    %c4 = arith.constant 4 : index
    %c0_9 = arith.constant 0 : index
    %8 = tpu.strided_load %arg1[%c4, %c0_9] {strides = array<i32: 2, 1>} : memref<48x16xf32, #tpu.memory_space<vmem>>, vector<10x16xf32>
    %c0_10 = arith.constant 0 : index
    %c64 = arith.constant 64 : index
    %9 = vector.load %arg15[%c0_10, %c64] : memref<40x80xf32, #tpu.memory_space<vmem>>, vector<10x16xf32>
    tpu.vector_store %arg15[%c0_10, %c64], %8 {strides = array<i32>} : memref<40x80xf32, #tpu.memory_space<vmem>>, vector<10x16xf32>,
    %c1_11 = arith.constant 1 : index
    %c0_12 = arith.constant 0 : index
    %10 = tpu.strided_load %arg1[%c1_11, %c0_12] {strides = array<i32: 2, 1>} : memref<48x16xf32, #tpu.memory_space<vmem>>, vector<10x16xf32>
    %c10 = arith.constant 10 : index
    %c0_13 = arith.constant 0 : index
    %11 = vector.load %arg15[%c10, %c0_13] : memref<40x80xf32, #tpu.memory_space<vmem>>, vector<10x16xf32>
    tpu.vector_store %arg15[%c10, %c0_13], %10 {strides = array<i32>} : memref<40x80xf32, #tpu.memory_space<vmem>>, vector<10x16xf32>,
    %c2_14 = arith.constant 2 : index
    %c0_15 = arith.constant 0 : index
    %12 = tpu.strided_load %arg1[%c2_14, %c0_15] {strides = array<i32: 2, 1>} : memref<48x16xf32, #tpu.memory_space<vmem>>, vector<10x16xf32>
    %c10_16 = arith.constant 10 : index
    %c16_17 = arith.constant 16 : index
    %13 = vector.load %arg15[%c10_16, %c16_17] : memref<40x80xf32, #tpu.memory_space<vmem>>, vector<10x16xf32>
    tpu.vector_store %arg15[%c10_16, %c16_17], %12 {strides = array<i32>} : memref<40x80xf32, #tpu.memory_space<vmem>>, vector<10x16xf32>,
    %c3_18 = arith.constant 3 : index
    %c0_19 = arith.constant 0 : index
    %14 = tpu.strided_load %arg1[%c3_18, %c0_19] {strides = array<i32: 2, 1>} : memref<48x16xf32, #tpu.memory_space<vmem>>, vector<10x16xf32>
    %c10_20 = arith.constant 10 : index
    %c32_21 = arith.constant 32 : index
    %15 = vector.load %arg15[%c10_20, %c32_21] : memref<40x80xf32, #tpu.memory_space<vmem>>, vector<10x16xf32>
    tpu.vector_store %arg15[%c10_20, %c32_21], %14 {strides = array<i32>} : memref<40x80xf32, #tpu.memory_space<vmem>>, vector<10x16xf32>,
    %c4_22 = arith.constant 4 : index
    %c0_23 = arith.constant 0 : index
    %16 = tpu.strided_load %arg1[%c4_22, %c0_23] {strides = array<i32: 2, 1>} : memref<48x16xf32, #tpu.memory_space<vmem>>, vector<10x16xf32>
    %c10_24 = arith.constant 10 : index
    %c48_25 = arith.constant 48 : index
    %17 = vector.load %arg15[%c10_24, %c48_25] : memref<40x80xf32, #tpu.memory_space<vmem>>, vector<10x16xf32>
    tpu.vector_store %arg15[%c10_24, %c48_25], %16 {strides = array<i32>} : memref<40x80xf32, #tpu.memory_space<vmem>>, vector<10x16xf32>,
    %c5 = arith.constant 5 : index
    %c0_26 = arith.constant 0 : index
    %18 = tpu.strided_load %arg1[%c5, %c0_26] {strides = array<i32: 2, 1>} : memref<48x16xf32, #tpu.memory_space<vmem>>, vector<10x16xf32>
    %c10_27 = arith.constant 10 : index
    %c64_28 = arith.constant 64 : index
    %19 = vector.load %arg15[%c10_27, %c64_28] : memref<40x80xf32, #tpu.memory_space<vmem>>, vector<10x16xf32>
    tpu.vector_store %arg15[%c10_27, %c64_28], %18 {strides = array<i32>} : memref<40x80xf32, #tpu.memory_space<vmem>>, vector<10x16xf32>,
    %c24 = arith.constant 24 : index
    %c0_29 = arith.constant 0 : index
    %20 = tpu.strided_load %arg1[%c24, %c0_29] {strides = array<i32: 2, 1>} : memref<48x16xf32, #tpu.memory_space<vmem>>, vector<10x16xf32>
    %c20 = arith.constant 20 : index
    %c0_30 = arith.constant 0 : index
    %21 = vector.load %arg15[%c20, %c0_30] : memref<40x80xf32, #tpu.memory_space<vmem>>, vector<10x16xf32>
    tpu.vector_store %arg15[%c20, %c0_30], %20 {strides = array<i32>} : memref<40x80xf32, #tpu.memory_space<vmem>>, vector<10x16xf32>,
    %c25 = arith.constant 25 : index
    %c0_31 = arith.constant 0 : index
    %22 = tpu.strided_load %arg1[%c25, %c0_31] {strides = array<i32: 2, 1>} : memref<48x16xf32, #tpu.memory_space<vmem>>, vector<10x16xf32>
    %c20_32 = arith.constant 20 : index
    %c16_33 = arith.constant 16 : index
    %23 = vector.load %arg15[%c20_32, %c16_33] : memref<40x80xf32, #tpu.memory_space<vmem>>, vector<10x16xf32>
    tpu.vector_store %arg15[%c20_32, %c16_33], %22 {strides = array<i32>} : memref<40x80xf32, #tpu.memory_space<vmem>>, vector<10x16xf32>,
    %c26 = arith.constant 26 : index
    %c0_34 = arith.constant 0 : index
    %24 = tpu.strided_load %arg1[%c26, %c0_34] {strides = array<i32: 2, 1>} : memref<48x16xf32, #tpu.memory_space<vmem>>, vector<10x16xf32>
    %c20_35 = arith.constant 20 : index
    %c32_36 = arith.constant 32 : index
    %25 = vector.load %arg15[%c20_35, %c32_36] : memref<40x80xf32, #tpu.memory_space<vmem>>, vector<10x16xf32>
    tpu.vector_store %arg15[%c20_35, %c32_36], %24 {strides = array<i32>} : memref<40x80xf32, #tpu.memory_space<vmem>>, vector<10x16xf32>,
    %c27 = arith.constant 27 : index
    %c0_37 = arith.constant 0 : index
    %26 = tpu.strided_load %arg1[%c27, %c0_37] {strides = array<i32: 2, 1>} : memref<48x16xf32, #tpu.memory_space<vmem>>, vector<10x16xf32>
    %c20_38 = arith.constant 20 : index
    %c48_39 = arith.constant 48 : index
    %27 = vector.load %arg15[%c20_38, %c48_39] : memref<40x80xf32, #tpu.memory_space<vmem>>, vector<10x16xf32>
    tpu.vector_store %arg15[%c20_38, %c48_39], %26 {strides = array<i32>} : memref<40x80xf32, #tpu.memory_space<vmem>>, vector<10x16xf32>,
    %c28 = arith.constant 28 : index
    %c0_40 = arith.constant 0 : index
    %28 = tpu.strided_load %arg1[%c28, %c0_40] {strides = array<i32: 2, 1>} : memref<48x16xf32, #tpu.memory_space<vmem>>, vector<10x16xf32>
    %c20_41 = arith.constant 20 : index
    %c64_42 = arith.constant 64 : index
    %29 = vector.load %arg15[%c20_41, %c64_42] : memref<40x80xf32, #tpu.memory_space<vmem>>, vector<10x16xf32>
    tpu.vector_store %arg15[%c20_41, %c64_42], %28 {strides = array<i32>} : memref<40x80xf32, #tpu.memory_space<vmem>>, vector<10x16xf32>,
    %c25_43 = arith.constant 25 : index
    %c0_44 = arith.constant 0 : index
    %30 = tpu.strided_load %arg1[%c25_43, %c0_44] {strides = array<i32: 2, 1>} : memref<48x16xf32, #tpu.memory_space<vmem>>, vector<10x16xf32>
    %c30 = arith.constant 30 : index
    %c0_45 = arith.constant 0 : index
    %31 = vector.load %arg15[%c30, %c0_45] : memref<40x80xf32, #tpu.memory_space<vmem>>, vector<10x16xf32>
    tpu.vector_store %arg15[%c30, %c0_45], %30 {strides = array<i32>} : memref<40x80xf32, #tpu.memory_space<vmem>>, vector<10x16xf32>,
    %c26_46 = arith.constant 26 : index
    %c0_47 = arith.constant 0 : index
    %32 = tpu.strided_load %arg1[%c26_46, %c0_47] {strides = array<i32: 2, 1>} : memref<48x16xf32, #tpu.memory_space<vmem>>, vector<10x16xf32>
    %c30_48 = arith.constant 30 : index
    %c16_49 = arith.constant 16 : index
    %33 = vector.load %arg15[%c30_48, %c16_49] : memref<40x80xf32, #tpu.memory_space<vmem>>, vector<10x16xf32>
    tpu.vector_store %arg15[%c30_48, %c16_49], %32 {strides = array<i32>} : memref<40x80xf32, #tpu.memory_space<vmem>>, vector<10x16xf32>,
    %c27_50 = arith.constant 27 : index
    %c0_51 = arith.constant 0 : index
    %34 = tpu.strided_load %arg1[%c27_50, %c0_51] {strides = array<i32: 2, 1>} : memref<48x16xf32, #tpu.memory_space<vmem>>, vector<10x16xf32>
    %c30_52 = arith.constant 30 : index
    %c32_53 = arith.constant 32 : index
    %35 = vector.load %arg15[%c30_52, %c32_53] : memref<40x80xf32, #tpu.memory_space<vmem>>, vector<10x16xf32>
    tpu.vector_store %arg15[%c30_52, %c32_53], %34 {strides = array<i32>} : memref<40x80xf32, #tpu.memory_space<vmem>>, vector<10x16xf32>,
    %c28_54 = arith.constant 28 : index
    %c0_55 = arith.constant 0 : index
    %36 = tpu.strided_load %arg1[%c28_54, %c0_55] {strides = array<i32: 2, 1>} : memref<48x16xf32, #tpu.memory_space<vmem>>, vector<10x16xf32>
    %c30_56 = arith.constant 30 : index
    %c48_57 = arith.constant 48 : index
    %37 = vector.load %arg15[%c30_56, %c48_57] : memref<40x80xf32, #tpu.memory_space<vmem>>, vector<10x16xf32>
    tpu.vector_store %arg15[%c30_56, %c48_57], %36 {strides = array<i32>} : memref<40x80xf32, #tpu.memory_space<vmem>>, vector<10x16xf32>,
    %c29 = arith.constant 29 : index
    %c0_58 = arith.constant 0 : index
    %38 = tpu.strided_load %arg1[%c29, %c0_58] {strides = array<i32: 2, 1>} : memref<48x16xf32, #tpu.memory_space<vmem>>, vector<10x16xf32>
    %c30_59 = arith.constant 30 : index
    %c64_60 = arith.constant 64 : index
    %39 = vector.load %arg15[%c30_59, %c64_60] : memref<40x80xf32, #tpu.memory_space<vmem>>, vector<10x16xf32>
    tpu.vector_store %arg15[%c30_59, %c64_60], %38 {strides = array<i32>} : memref<40x80xf32, #tpu.memory_space<vmem>>, vector<10x16xf32>,
    %c0_61 = arith.constant 0 : index
    %c0_62 = arith.constant 0 : index
    %40 = vector.load %arg15[%c0_61, %c0_62] : memref<40x80xf32, #tpu.memory_space<vmem>>, vector<40x80xf32>
    %c0_63 = arith.constant 0 : index
    %c0_64 = arith.constant 0 : index
    %41 = vector.load %arg2[%c0_63, %c0_64] : memref<80x64xf32, #tpu.memory_space<vmem>>, vector<80x64xf32>
    %cst = arith.constant dense<0.000000e+00> : vector<40x64xf32>
    %42 = tpu.matmul %40, %41, %cst {dimension_numbers = #tpu.dot_dimension_numbers<[1], [0], [0], [1], [0, 0, 1, 1], [], []>} : vector<40x80xf32>, vector<80x64xf32>, vector<40x64xf32> -> vector<40x64xf32>
    %c0_65 = arith.constant 0 : index
    %c0_66 = arith.constant 0 : index
    %43 = vector.load %arg3[%c0_65, %c0_66] : memref<1x64xf32, #tpu.memory_space<vmem>>, vector<1x64xf32>
    %44 = vector.broadcast %43 : vector<1x64xf32> to vector<40x64xf32>
    %45 = arith.mulf %42, %44 : vector<40x64xf32>
    %c0_67 = arith.constant 0 : index
    %c0_68 = arith.constant 0 : index
    %46 = vector.load %arg4[%c0_67, %c0_68] : memref<1x64xf32, #tpu.memory_space<vmem>>, vector<1x64xf32>
    %47 = vector.broadcast %46 : vector<1x64xf32> to vector<40x64xf32>
    %48 = arith.addf %45, %47 : vector<40x64xf32>
    %cst_69 = arith.constant 0.000000e+00 : f32
    %49 = vector.broadcast %cst_69 : f32 to vector<40x64xf32>
    %50 = arith.maximumf %48, %49 : vector<40x64xf32>
    %c0_70 = arith.constant 0 : index
    %c0_71 = arith.constant 0 : index
    %51 = vector.load %arg16[%c0_70, %c0_71] : memref<40x64xf32, #tpu.memory_space<vmem>>, vector<40x64xf32>
    tpu.vector_store %arg16[%c0_70, %c0_71], %50 {strides = array<i32>} : memref<40x64xf32, #tpu.memory_space<vmem>>, vector<40x64xf32>,
    %c0_72 = arith.constant 0 : index
    %c0_73 = arith.constant 0 : index
    %52 = vector.load %arg16[%c0_72, %c0_73] : memref<40x64xf32, #tpu.memory_space<vmem>>, vector<10x64xf32>
    %c10_74 = arith.constant 10 : index
    %c0_75 = arith.constant 0 : index
    %53 = vector.load %arg16[%c10_74, %c0_75] : memref<40x64xf32, #tpu.memory_space<vmem>>, vector<10x64xf32>
    %54 = arith.maximumf %52, %53 : vector<10x64xf32>
    %c0_76 = arith.constant 0 : index
    %c0_77 = arith.constant 0 : index
    %55 = vector.load %arg17[%c0_76, %c0_77] : memref<20x64xf32, #tpu.memory_space<vmem>>, vector<10x64xf32>
    tpu.vector_store %arg17[%c0_76, %c0_77], %54 {strides = array<i32>} : memref<20x64xf32, #tpu.memory_space<vmem>>, vector<10x64xf32>,
    %c20_78 = arith.constant 20 : index
    %c0_79 = arith.constant 0 : index
    %56 = vector.load %arg16[%c20_78, %c0_79] : memref<40x64xf32, #tpu.memory_space<vmem>>, vector<10x64xf32>
    %c30_80 = arith.constant 30 : index
    %c0_81 = arith.constant 0 : index
    %57 = vector.load %arg16[%c30_80, %c0_81] : memref<40x64xf32, #tpu.memory_space<vmem>>, vector<10x64xf32>
    %58 = arith.maximumf %56, %57 : vector<10x64xf32>
    %c10_82 = arith.constant 10 : index
    %c0_83 = arith.constant 0 : index
    %59 = vector.load %arg17[%c10_82, %c0_83] : memref<20x64xf32, #tpu.memory_space<vmem>>, vector<10x64xf32>
    tpu.vector_store %arg17[%c10_82, %c0_83], %58 {strides = array<i32>} : memref<20x64xf32, #tpu.memory_space<vmem>>, vector<10x64xf32>,
    %c0_84 = arith.constant 0 : index
    %c0_85 = arith.constant 0 : index
    %60 = tpu.strided_load %arg17[%c0_84, %c0_85] {strides = array<i32: 2, 1>} : memref<20x64xf32, #tpu.memory_space<vmem>>, vector<3x64xf32>
    %c0_86 = arith.constant 0 : index
    %c0_87 = arith.constant 0 : index
    %61 = vector.load %arg18[%c0_86, %c0_87] : memref<12x320xf32, #tpu.memory_space<vmem>>, vector<3x64xf32>
    tpu.vector_store %arg18[%c0_86, %c0_87], %60 {strides = array<i32>} : memref<12x320xf32, #tpu.memory_space<vmem>>, vector<3x64xf32>,
    %c1_88 = arith.constant 1 : index
    %c0_89 = arith.constant 0 : index
    %62 = tpu.strided_load %arg17[%c1_88, %c0_89] {strides = array<i32: 2, 1>} : memref<20x64xf32, #tpu.memory_space<vmem>>, vector<3x64xf32>
    %c0_90 = arith.constant 0 : index
    %c64_91 = arith.constant 64 : index
    %63 = vector.load %arg18[%c0_90, %c64_91] : memref<12x320xf32, #tpu.memory_space<vmem>>, vector<3x64xf32>
    tpu.vector_store %arg18[%c0_90, %c64_91], %62 {strides = array<i32>} : memref<12x320xf32, #tpu.memory_space<vmem>>, vector<3x64xf32>,
    %c2_92 = arith.constant 2 : index
    %c0_93 = arith.constant 0 : index
    %64 = tpu.strided_load %arg17[%c2_92, %c0_93] {strides = array<i32: 2, 1>} : memref<20x64xf32, #tpu.memory_space<vmem>>, vector<3x64xf32>
    %c0_94 = arith.constant 0 : index
    %c128 = arith.constant 128 : index
    %65 = vector.load %arg18[%c0_94, %c128] : memref<12x320xf32, #tpu.memory_space<vmem>>, vector<3x64xf32>
    tpu.vector_store %arg18[%c0_94, %c128], %64 {strides = array<i32>} : memref<12x320xf32, #tpu.memory_space<vmem>>, vector<3x64xf32>,
    %c3_95 = arith.constant 3 : index
    %c0_96 = arith.constant 0 : index
    %66 = tpu.strided_load %arg17[%c3_95, %c0_96] {strides = array<i32: 2, 1>} : memref<20x64xf32, #tpu.memory_space<vmem>>, vector<3x64xf32>
    %c0_97 = arith.constant 0 : index
    %c192 = arith.constant 192 : index
    %67 = vector.load %arg18[%c0_97, %c192] : memref<12x320xf32, #tpu.memory_space<vmem>>, vector<3x64xf32>
    tpu.vector_store %arg18[%c0_97, %c192], %66 {strides = array<i32>} : memref<12x320xf32, #tpu.memory_space<vmem>>, vector<3x64xf32>,
    %c4_98 = arith.constant 4 : index
    %c0_99 = arith.constant 0 : index
    %68 = tpu.strided_load %arg17[%c4_98, %c0_99] {strides = array<i32: 2, 1>} : memref<20x64xf32, #tpu.memory_space<vmem>>, vector<3x64xf32>
    %c0_100 = arith.constant 0 : index
    %c256 = arith.constant 256 : index
    %69 = vector.load %arg18[%c0_100, %c256] : memref<12x320xf32, #tpu.memory_space<vmem>>, vector<3x64xf32>
    tpu.vector_store %arg18[%c0_100, %c256], %68 {strides = array<i32>} : memref<12x320xf32, #tpu.memory_space<vmem>>, vector<3x64xf32>,
    %c1_101 = arith.constant 1 : index
    %c0_102 = arith.constant 0 : index
    %70 = tpu.strided_load %arg17[%c1_101, %c0_102] {strides = array<i32: 2, 1>} : memref<20x64xf32, #tpu.memory_space<vmem>>, vector<3x64xf32>
    %c3_103 = arith.constant 3 : index
    %c0_104 = arith.constant 0 : index
    %71 = vector.load %arg18[%c3_103, %c0_104] : memref<12x320xf32, #tpu.memory_space<vmem>>, vector<3x64xf32>
    tpu.vector_store %arg18[%c3_103, %c0_104], %70 {strides = array<i32>} : memref<12x320xf32, #tpu.memory_space<vmem>>, vector<3x64xf32>,
    %c2_105 = arith.constant 2 : index
    %c0_106 = arith.constant 0 : index
    %72 = tpu.strided_load %arg17[%c2_105, %c0_106] {strides = array<i32: 2, 1>} : memref<20x64xf32, #tpu.memory_space<vmem>>, vector<3x64xf32>
    %c3_107 = arith.constant 3 : index
    %c64_108 = arith.constant 64 : index
    %73 = vector.load %arg18[%c3_107, %c64_108] : memref<12x320xf32, #tpu.memory_space<vmem>>, vector<3x64xf32>
    tpu.vector_store %arg18[%c3_107, %c64_108], %72 {strides = array<i32>} : memref<12x320xf32, #tpu.memory_space<vmem>>, vector<3x64xf32>,
    %c3_109 = arith.constant 3 : index
    %c0_110 = arith.constant 0 : index
    %74 = tpu.strided_load %arg17[%c3_109, %c0_110] {strides = array<i32: 2, 1>} : memref<20x64xf32, #tpu.memory_space<vmem>>, vector<3x64xf32>
    %c3_111 = arith.constant 3 : index
    %c128_112 = arith.constant 128 : index
    %75 = vector.load %arg18[%c3_111, %c128_112] : memref<12x320xf32, #tpu.memory_space<vmem>>, vector<3x64xf32>
    tpu.vector_store %arg18[%c3_111, %c128_112], %74 {strides = array<i32>} : memref<12x320xf32, #tpu.memory_space<vmem>>, vector<3x64xf32>,
    %c4_113 = arith.constant 4 : index
    %c0_114 = arith.constant 0 : index
    %76 = tpu.strided_load %arg17[%c4_113, %c0_114] {strides = array<i32: 2, 1>} : memref<20x64xf32, #tpu.memory_space<vmem>>, vector<3x64xf32>
    %c3_115 = arith.constant 3 : index
    %c192_116 = arith.constant 192 : index
    %77 = vector.load %arg18[%c3_115, %c192_116] : memref<12x320xf32, #tpu.memory_space<vmem>>, vector<3x64xf32>
    tpu.vector_store %arg18[%c3_115, %c192_116], %76 {strides = array<i32>} : memref<12x320xf32, #tpu.memory_space<vmem>>, vector<3x64xf32>,
    %c5_117 = arith.constant 5 : index
    %c0_118 = arith.constant 0 : index
    %78 = tpu.strided_load %arg17[%c5_117, %c0_118] {strides = array<i32: 2, 1>} : memref<20x64xf32, #tpu.memory_space<vmem>>, vector<3x64xf32>
    %c3_119 = arith.constant 3 : index
    %c256_120 = arith.constant 256 : index
    %79 = vector.load %arg18[%c3_119, %c256_120] : memref<12x320xf32, #tpu.memory_space<vmem>>, vector<3x64xf32>
    tpu.vector_store %arg18[%c3_119, %c256_120], %78 {strides = array<i32>} : memref<12x320xf32, #tpu.memory_space<vmem>>, vector<3x64xf32>,
    %c10_121 = arith.constant 10 : index
    %c0_122 = arith.constant 0 : index
    %80 = tpu.strided_load %arg17[%c10_121, %c0_122] {strides = array<i32: 2, 1>} : memref<20x64xf32, #tpu.memory_space<vmem>>, vector<3x64xf32>
    %c6 = arith.constant 6 : index
    %c0_123 = arith.constant 0 : index
    %81 = vector.load %arg18[%c6, %c0_123] : memref<12x320xf32, #tpu.memory_space<vmem>>, vector<3x64xf32>
    tpu.vector_store %arg18[%c6, %c0_123], %80 {strides = array<i32>} : memref<12x320xf32, #tpu.memory_space<vmem>>, vector<3x64xf32>,
    %c11 = arith.constant 11 : index
    %c0_124 = arith.constant 0 : index
    %82 = tpu.strided_load %arg17[%c11, %c0_124] {strides = array<i32: 2, 1>} : memref<20x64xf32, #tpu.memory_space<vmem>>, vector<3x64xf32>
    %c6_125 = arith.constant 6 : index
    %c64_126 = arith.constant 64 : index
    %83 = vector.load %arg18[%c6_125, %c64_126] : memref<12x320xf32, #tpu.memory_space<vmem>>, vector<3x64xf32>
    tpu.vector_store %arg18[%c6_125, %c64_126], %82 {strides = array<i32>} : memref<12x320xf32, #tpu.memory_space<vmem>>, vector<3x64xf32>,
    %c12 = arith.constant 12 : index
    %c0_127 = arith.constant 0 : index
    %84 = tpu.strided_load %arg17[%c12, %c0_127] {strides = array<i32: 2, 1>} : memref<20x64xf32, #tpu.memory_space<vmem>>, vector<3x64xf32>
    %c6_128 = arith.constant 6 : index
    %c128_129 = arith.constant 128 : index
    %85 = vector.load %arg18[%c6_128, %c128_129] : memref<12x320xf32, #tpu.memory_space<vmem>>, vector<3x64xf32>
    tpu.vector_store %arg18[%c6_128, %c128_129], %84 {strides = array<i32>} : memref<12x320xf32, #tpu.memory_space<vmem>>, vector<3x64xf32>,
    %c13 = arith.constant 13 : index
    %c0_130 = arith.constant 0 : index
    %86 = tpu.strided_load %arg17[%c13, %c0_130] {strides = array<i32: 2, 1>} : memref<20x64xf32, #tpu.memory_space<vmem>>, vector<3x64xf32>
    %c6_131 = arith.constant 6 : index
    %c192_132 = arith.constant 192 : index
    %87 = vector.load %arg18[%c6_131, %c192_132] : memref<12x320xf32, #tpu.memory_space<vmem>>, vector<3x64xf32>
    tpu.vector_store %arg18[%c6_131, %c192_132], %86 {strides = array<i32>} : memref<12x320xf32, #tpu.memory_space<vmem>>, vector<3x64xf32>,
    %c14 = arith.constant 14 : index
    %c0_133 = arith.constant 0 : index
    %88 = tpu.strided_load %arg17[%c14, %c0_133] {strides = array<i32: 2, 1>} : memref<20x64xf32, #tpu.memory_space<vmem>>, vector<3x64xf32>
    %c6_134 = arith.constant 6 : index
    %c256_135 = arith.constant 256 : index
    %89 = vector.load %arg18[%c6_134, %c256_135] : memref<12x320xf32, #tpu.memory_space<vmem>>, vector<3x64xf32>
    tpu.vector_store %arg18[%c6_134, %c256_135], %88 {strides = array<i32>} : memref<12x320xf32, #tpu.memory_space<vmem>>, vector<3x64xf32>,
    %c11_136 = arith.constant 11 : index
    %c0_137 = arith.constant 0 : index
    %90 = tpu.strided_load %arg17[%c11_136, %c0_137] {strides = array<i32: 2, 1>} : memref<20x64xf32, #tpu.memory_space<vmem>>, vector<3x64xf32>
    %c9 = arith.constant 9 : index
    %c0_138 = arith.constant 0 : index
    %91 = vector.load %arg18[%c9, %c0_138] : memref<12x320xf32, #tpu.memory_space<vmem>>, vector<3x64xf32>
    tpu.vector_store %arg18[%c9, %c0_138], %90 {strides = array<i32>} : memref<12x320xf32, #tpu.memory_space<vmem>>, vector<3x64xf32>,
    %c12_139 = arith.constant 12 : index
    %c0_140 = arith.constant 0 : index
    %92 = tpu.strided_load %arg17[%c12_139, %c0_140] {strides = array<i32: 2, 1>} : memref<20x64xf32, #tpu.memory_space<vmem>>, vector<3x64xf32>
    %c9_141 = arith.constant 9 : index
    %c64_142 = arith.constant 64 : index
    %93 = vector.load %arg18[%c9_141, %c64_142] : memref<12x320xf32, #tpu.memory_space<vmem>>, vector<3x64xf32>
    tpu.vector_store %arg18[%c9_141, %c64_142], %92 {strides = array<i32>} : memref<12x320xf32, #tpu.memory_space<vmem>>, vector<3x64xf32>,
    %c13_143 = arith.constant 13 : index
    %c0_144 = arith.constant 0 : index
    %94 = tpu.strided_load %arg17[%c13_143, %c0_144] {strides = array<i32: 2, 1>} : memref<20x64xf32, #tpu.memory_space<vmem>>, vector<3x64xf32>
    %c9_145 = arith.constant 9 : index
    %c128_146 = arith.constant 128 : index
    %95 = vector.load %arg18[%c9_145, %c128_146] : memref<12x320xf32, #tpu.memory_space<vmem>>, vector<3x64xf32>
    tpu.vector_store %arg18[%c9_145, %c128_146], %94 {strides = array<i32>} : memref<12x320xf32, #tpu.memory_space<vmem>>, vector<3x64xf32>,
    %c14_147 = arith.constant 14 : index
    %c0_148 = arith.constant 0 : index
    %96 = tpu.strided_load %arg17[%c14_147, %c0_148] {strides = array<i32: 2, 1>} : memref<20x64xf32, #tpu.memory_space<vmem>>, vector<3x64xf32>
    %c9_149 = arith.constant 9 : index
    %c192_150 = arith.constant 192 : index
    %97 = vector.load %arg18[%c9_149, %c192_150] : memref<12x320xf32, #tpu.memory_space<vmem>>, vector<3x64xf32>
    tpu.vector_store %arg18[%c9_149, %c192_150], %96 {strides = array<i32>} : memref<12x320xf32, #tpu.memory_space<vmem>>, vector<3x64xf32>,
    %c15 = arith.constant 15 : index
    %c0_151 = arith.constant 0 : index
    %98 = tpu.strided_load %arg17[%c15, %c0_151] {strides = array<i32: 2, 1>} : memref<20x64xf32, #tpu.memory_space<vmem>>, vector<3x64xf32>
    %c9_152 = arith.constant 9 : index
    %c256_153 = arith.constant 256 : index
    %99 = vector.load %arg18[%c9_152, %c256_153] : memref<12x320xf32, #tpu.memory_space<vmem>>, vector<3x64xf32>
    tpu.vector_store %arg18[%c9_152, %c256_153], %98 {strides = array<i32>} : memref<12x320xf32, #tpu.memory_space<vmem>>, vector<3x64xf32>,
    %c0_154 = arith.constant 0 : index
    %c0_155 = arith.constant 0 : index
    %100 = vector.load %arg18[%c0_154, %c0_155] : memref<12x320xf32, #tpu.memory_space<vmem>>, vector<12x320xf32>
    %c0_156 = arith.constant 0 : index
    %c0_157 = arith.constant 0 : index
    %101 = vector.load %arg5[%c0_156, %c0_157] : memref<320x128xf32, #tpu.memory_space<vmem>>, vector<320x128xf32>
    %cst_158 = arith.constant dense<0.000000e+00> : vector<12x128xf32>
    %102 = tpu.matmul %100, %101, %cst_158 {dimension_numbers = #tpu.dot_dimension_numbers<[1], [0], [0], [1], [0, 0, 1, 1], [], []>} : vector<12x320xf32>, vector<320x128xf32>, vector<12x128xf32> -> vector<12x128xf32>
    %c0_159 = arith.constant 0 : index
    %c0_160 = arith.constant 0 : index
    %103 = vector.load %arg6[%c0_159, %c0_160] : memref<1x128xf32, #tpu.memory_space<vmem>>, vector<1x128xf32>
    %104 = vector.broadcast %103 : vector<1x128xf32> to vector<12x128xf32>
    %105 = arith.mulf %102, %104 : vector<12x128xf32>
    %c0_161 = arith.constant 0 : index
    %c0_162 = arith.constant 0 : index
    %106 = vector.load %arg7[%c0_161, %c0_162] : memref<1x128xf32, #tpu.memory_space<vmem>>, vector<1x128xf32>
    %107 = vector.broadcast %106 : vector<1x128xf32> to vector<12x128xf32>
    %108 = arith.addf %105, %107 : vector<12x128xf32>
    %cst_163 = arith.constant 0.000000e+00 : f32
    %109 = vector.broadcast %cst_163 : f32 to vector<12x128xf32>
    %110 = arith.maximumf %108, %109 : vector<12x128xf32>
    %c0_164 = arith.constant 0 : index
    %c0_165 = arith.constant 0 : index
    %111 = vector.load %arg19[%c0_164, %c0_165] : memref<12x128xf32, #tpu.memory_space<vmem>>, vector<12x128xf32>
    tpu.vector_store %arg19[%c0_164, %c0_165], %110 {strides = array<i32>} : memref<12x128xf32, #tpu.memory_space<vmem>>, vector<12x128xf32>,
    %c0_166 = arith.constant 0 : index
    %c0_167 = arith.constant 0 : index
    %112 = vector.load %arg19[%c0_166, %c0_167] : memref<12x128xf32, #tpu.memory_space<vmem>>, vector<3x128xf32>
    %c3_168 = arith.constant 3 : index
    %c0_169 = arith.constant 0 : index
    %113 = vector.load %arg19[%c3_168, %c0_169] : memref<12x128xf32, #tpu.memory_space<vmem>>, vector<3x128xf32>
    %114 = arith.maximumf %112, %113 : vector<3x128xf32>
    %c0_170 = arith.constant 0 : index
    %c0_171 = arith.constant 0 : index
    %115 = vector.load %arg20[%c0_170, %c0_171] : memref<6x128xf32, #tpu.memory_space<vmem>>, vector<3x128xf32>
    tpu.vector_store %arg20[%c0_170, %c0_171], %114 {strides = array<i32>} : memref<6x128xf32, #tpu.memory_space<vmem>>, vector<3x128xf32>,
    %c6_172 = arith.constant 6 : index
    %c0_173 = arith.constant 0 : index
    %116 = vector.load %arg19[%c6_172, %c0_173] : memref<12x128xf32, #tpu.memory_space<vmem>>, vector<3x128xf32>
    %c9_174 = arith.constant 9 : index
    %c0_175 = arith.constant 0 : index
    %117 = vector.load %arg19[%c9_174, %c0_175] : memref<12x128xf32, #tpu.memory_space<vmem>>, vector<3x128xf32>
    %118 = arith.maximumf %116, %117 : vector<3x128xf32>
    %c3_176 = arith.constant 3 : index
    %c0_177 = arith.constant 0 : index
    %119 = vector.load %arg20[%c3_176, %c0_177] : memref<6x128xf32, #tpu.memory_space<vmem>>, vector<3x128xf32>
    tpu.vector_store %arg20[%c3_176, %c0_177], %118 {strides = array<i32>} : memref<6x128xf32, #tpu.memory_space<vmem>>, vector<3x128xf32>,
    %c0_178 = arith.constant 0 : index
    %c0_179 = arith.constant 0 : index
    %120 = vector.load %arg20[%c0_178, %c0_179] : memref<6x128xf32, #tpu.memory_space<vmem>>, vector<1x128xf32>
    %c0_180 = arith.constant 0 : index
    %c0_181 = arith.constant 0 : index
    %121 = vector.load %arg21[%c0_180, %c0_181] : memref<2x384xf32, #tpu.memory_space<vmem>>, vector<1x128xf32>
    tpu.vector_store %arg21[%c0_180, %c0_181], %120 {strides = array<i32>} : memref<2x384xf32, #tpu.memory_space<vmem>>, vector<1x128xf32>,
    %c1_182 = arith.constant 1 : index
    %c0_183 = arith.constant 0 : index
    %122 = vector.load %arg20[%c1_182, %c0_183] : memref<6x128xf32, #tpu.memory_space<vmem>>, vector<1x128xf32>
    %c0_184 = arith.constant 0 : index
    %c128_185 = arith.constant 128 : index
    %123 = vector.load %arg21[%c0_184, %c128_185] : memref<2x384xf32, #tpu.memory_space<vmem>>, vector<1x128xf32>
    tpu.vector_store %arg21[%c0_184, %c128_185], %122 {strides = array<i32>} : memref<2x384xf32, #tpu.memory_space<vmem>>, vector<1x128xf32>,
    %c2_186 = arith.constant 2 : index
    %c0_187 = arith.constant 0 : index
    %124 = vector.load %arg20[%c2_186, %c0_187] : memref<6x128xf32, #tpu.memory_space<vmem>>, vector<1x128xf32>
    %c0_188 = arith.constant 0 : index
    %c256_189 = arith.constant 256 : index
    %125 = vector.load %arg21[%c0_188, %c256_189] : memref<2x384xf32, #tpu.memory_space<vmem>>, vector<1x128xf32>
    tpu.vector_store %arg21[%c0_188, %c256_189], %124 {strides = array<i32>} : memref<2x384xf32, #tpu.memory_space<vmem>>, vector<1x128xf32>,
    %c3_190 = arith.constant 3 : index
    %c0_191 = arith.constant 0 : index
    %126 = vector.load %arg20[%c3_190, %c0_191] : memref<6x128xf32, #tpu.memory_space<vmem>>, vector<1x128xf32>
    %c1_192 = arith.constant 1 : index
    %c0_193 = arith.constant 0 : index
    %127 = vector.load %arg21[%c1_192, %c0_193] : memref<2x384xf32, #tpu.memory_space<vmem>>, vector<1x128xf32>
    tpu.vector_store %arg21[%c1_192, %c0_193], %126 {strides = array<i32>} : memref<2x384xf32, #tpu.memory_space<vmem>>, vector<1x128xf32>,
    %c4_194 = arith.constant 4 : index
    %c0_195 = arith.constant 0 : index
    %128 = vector.load %arg20[%c4_194, %c0_195] : memref<6x128xf32, #tpu.memory_space<vmem>>, vector<1x128xf32>
    %c1_196 = arith.constant 1 : index
    %c128_197 = arith.constant 128 : index
    %129 = vector.load %arg21[%c1_196, %c128_197] : memref<2x384xf32, #tpu.memory_space<vmem>>, vector<1x128xf32>
    tpu.vector_store %arg21[%c1_196, %c128_197], %128 {strides = array<i32>} : memref<2x384xf32, #tpu.memory_space<vmem>>, vector<1x128xf32>,
    %c5_198 = arith.constant 5 : index
    %c0_199 = arith.constant 0 : index
    %130 = vector.load %arg20[%c5_198, %c0_199] : memref<6x128xf32, #tpu.memory_space<vmem>>, vector<1x128xf32>
    %c1_200 = arith.constant 1 : index
    %c256_201 = arith.constant 256 : index
    %131 = vector.load %arg21[%c1_200, %c256_201] : memref<2x384xf32, #tpu.memory_space<vmem>>, vector<1x128xf32>
    tpu.vector_store %arg21[%c1_200, %c256_201], %130 {strides = array<i32>} : memref<2x384xf32, #tpu.memory_space<vmem>>, vector<1x128xf32>,
    %c0_202 = arith.constant 0 : index
    %c0_203 = arith.constant 0 : index
    %132 = vector.load %arg21[%c0_202, %c0_203] : memref<2x384xf32, #tpu.memory_space<vmem>>, vector<2x384xf32>
    %c0_204 = arith.constant 0 : index
    %c0_205 = arith.constant 0 : index
    %133 = vector.load %arg8[%c0_204, %c0_205] : memref<384x64xf32, #tpu.memory_space<vmem>>, vector<384x64xf32>
    %cst_206 = arith.constant dense<0.000000e+00> : vector<2x64xf32>
    %134 = tpu.matmul %132, %133, %cst_206 {dimension_numbers = #tpu.dot_dimension_numbers<[1], [0], [0], [1], [0, 0, 1, 1], [], []>} : vector<2x384xf32>, vector<384x64xf32>, vector<2x64xf32> -> vector<2x64xf32>
    %c0_207 = arith.constant 0 : index
    %c0_208 = arith.constant 0 : index
    %135 = vector.load %arg9[%c0_207, %c0_208] : memref<1x64xf32, #tpu.memory_space<vmem>>, vector<1x64xf32>
    %136 = vector.broadcast %135 : vector<1x64xf32> to vector<2x64xf32>
    %137 = arith.addf %134, %136 : vector<2x64xf32>
    %cst_209 = arith.constant 0.000000e+00 : f32
    %138 = vector.broadcast %cst_209 : f32 to vector<2x64xf32>
    %139 = arith.maximumf %137, %138 : vector<2x64xf32>
    %c0_210 = arith.constant 0 : index
    %c0_211 = arith.constant 0 : index
    %140 = vector.load %arg10[%c0_210, %c0_211] : memref<64x32xf32, #tpu.memory_space<vmem>>, vector<64x32xf32>
    %cst_212 = arith.constant dense<0.000000e+00> : vector<2x32xf32>
    %141 = tpu.matmul %139, %140, %cst_212 {dimension_numbers = #tpu.dot_dimension_numbers<[1], [0], [0], [1], [0, 0, 1, 1], [], []>} : vector<2x64xf32>, vector<64x32xf32>, vector<2x32xf32> -> vector<2x32xf32>
    %c0_213 = arith.constant 0 : index
    %c0_214 = arith.constant 0 : index
    %142 = vector.load %arg11[%c0_213, %c0_214] : memref<1x32xf32, #tpu.memory_space<vmem>>, vector<1x32xf32>
    %143 = vector.broadcast %142 : vector<1x32xf32> to vector<2x32xf32>
    %144 = arith.addf %141, %143 : vector<2x32xf32>
    %cst_215 = arith.constant 0.000000e+00 : f32
    %145 = vector.broadcast %cst_215 : f32 to vector<2x32xf32>
    %146 = arith.maximumf %144, %145 : vector<2x32xf32>
    %c0_216 = arith.constant 0 : index
    %c0_217 = arith.constant 0 : index
    %147 = vector.load %arg12[%c0_216, %c0_217] : memref<32x2xf32, #tpu.memory_space<vmem>>, vector<32x2xf32>
    %cst_218 = arith.constant dense<0.000000e+00> : vector<2x2xf32>
    %148 = tpu.matmul %146, %147, %cst_218 {dimension_numbers = #tpu.dot_dimension_numbers<[1], [0], [0], [1], [0, 0, 1, 1], [], []>} : vector<2x32xf32>, vector<32x2xf32>, vector<2x2xf32> -> vector<2x2xf32>
    %c0_219 = arith.constant 0 : index
    %c0_220 = arith.constant 0 : index
    %149 = vector.load %arg13[%c0_219, %c0_220] : memref<1x2xf32, #tpu.memory_space<vmem>>, vector<1x2xf32>
    %150 = vector.broadcast %149 : vector<1x2xf32> to vector<2x2xf32>
    %151 = arith.addf %148, %150 : vector<2x2xf32>
    %cst_221 = arith.constant dense<0xFF800000> : vector<2xf32>
    %152 = vector.multi_reduction <maximumf>, %151, %cst_221 [1] : vector<2x2xf32> to vector<2xf32>
    %153 = vector.shape_cast %152 : vector<2xf32> to vector<2x1xf32>
    %154 = vector.broadcast %153 : vector<2x1xf32> to vector<2x2xf32>
    %155 = arith.subf %151, %154 : vector<2x2xf32>
    %156 = math.exp %155 : vector<2x2xf32>
    %cst_222 = arith.constant dense<0.000000e+00> : vector<2xf32>
    %157 = vector.multi_reduction <add>, %156, %cst_222 [1] : vector<2x2xf32> to vector<2xf32>
    %158 = vector.shape_cast %157 : vector<2xf32> to vector<2x1xf32>
    %159 = math.log %158 : vector<2x1xf32>
    %160 = vector.broadcast %159 : vector<2x1xf32> to vector<2x2xf32>
    %161 = arith.subf %155, %160 : vector<2x2xf32>
    %c0_223 = arith.constant 0 : index
    %c0_224 = arith.constant 0 : index
    %162 = vector.load %arg14[%c0_223, %c0_224] : memref<2x2xf32, #tpu.memory_space<vmem>>, vector<2x2xf32>
    tpu.vector_store %arg14[%c0_223, %c0_224], %161 {strides = array<i32>} : memref<2x2xf32, #tpu.memory_space<vmem>>, vector<2x2xf32>,
    return
  }
  func.func @transform_0(%arg0: i32) -> (i32, i32) {
    %c0_i32 = arith.constant 0 : i32
    %c0_i32_0 = arith.constant 0 : i32
    return %arg0, %c0_i32 : i32, i32
  }
  func.func @transform_1(%arg0: i32) -> (i32, i32) {
    %c0_i32 = arith.constant 0 : i32
    %c0_i32_0 = arith.constant 0 : i32
    %c0_i32_1 = arith.constant 0 : i32
    return %c0_i32, %c0_i32_0 : i32, i32
  }
  func.func @transform_2(%arg0: i32) -> (i32, i32) {
    %c0_i32 = arith.constant 0 : i32
    %c0_i32_0 = arith.constant 0 : i32
    %c0_i32_1 = arith.constant 0 : i32
    return %c0_i32, %c0_i32_0 : i32, i32
  }
  func.func @transform_3(%arg0: i32) -> (i32, i32) {
    %c0_i32 = arith.constant 0 : i32
    %c0_i32_0 = arith.constant 0 : i32
    %c0_i32_1 = arith.constant 0 : i32
    return %c0_i32, %c0_i32_0 : i32, i32
  }
  func.func @transform_4(%arg0: i32) -> (i32, i32) {
    %c0_i32 = arith.constant 0 : i32
    %c0_i32_0 = arith.constant 0 : i32
    %c0_i32_1 = arith.constant 0 : i32
    return %c0_i32, %c0_i32_0 : i32, i32
  }
  func.func @transform_5(%arg0: i32) -> (i32, i32) {
    %c0_i32 = arith.constant 0 : i32
    %c0_i32_0 = arith.constant 0 : i32
    %c0_i32_1 = arith.constant 0 : i32
    return %c0_i32, %c0_i32_0 : i32, i32
  }
  func.func @transform_6(%arg0: i32) -> (i32, i32) {
    %c0_i32 = arith.constant 0 : i32
    %c0_i32_0 = arith.constant 0 : i32
    %c0_i32_1 = arith.constant 0 : i32
    return %c0_i32, %c0_i32_0 : i32, i32
  }
  func.func @transform_7(%arg0: i32) -> (i32, i32) {
    %c0_i32 = arith.constant 0 : i32
    %c0_i32_0 = arith.constant 0 : i32
    %c0_i32_1 = arith.constant 0 : i32
    return %c0_i32, %c0_i32_0 : i32, i32
  }
  func.func @transform_8(%arg0: i32) -> (i32, i32) {
    %c0_i32 = arith.constant 0 : i32
    %c0_i32_0 = arith.constant 0 : i32
    %c0_i32_1 = arith.constant 0 : i32
    return %c0_i32, %c0_i32_0 : i32, i32
  }
  func.func @transform_9(%arg0: i32) -> (i32, i32) {
    %c0_i32 = arith.constant 0 : i32
    %c0_i32_0 = arith.constant 0 : i32
    %c0_i32_1 = arith.constant 0 : i32
    return %c0_i32, %c0_i32_0 : i32, i32
  }
  func.func @transform_10(%arg0: i32) -> (i32, i32) {
    %c0_i32 = arith.constant 0 : i32
    %c0_i32_0 = arith.constant 0 : i32
    %c0_i32_1 = arith.constant 0 : i32
    return %c0_i32, %c0_i32_0 : i32, i32
  }
  func.func @transform_11(%arg0: i32) -> (i32, i32) {
    %c0_i32 = arith.constant 0 : i32
    %c0_i32_0 = arith.constant 0 : i32
    %c0_i32_1 = arith.constant 0 : i32
    return %c0_i32, %c0_i32_0 : i32, i32
  }
  func.func @transform_12(%arg0: i32) -> (i32, i32) {
    %c0_i32 = arith.constant 0 : i32
    %c0_i32_0 = arith.constant 0 : i32
    %c0_i32_1 = arith.constant 0 : i32
    return %c0_i32, %c0_i32_0 : i32, i32
  }
  func.func @transform_13(%arg0: i32) -> (i32, i32) {
    %c0_i32 = arith.constant 0 : i32
    %c0_i32_0 = arith.constant 0 : i32
    return %arg0, %c0_i32 : i32, i32
  }
}

</mosaic_0001>

<llo_original>
// kernel: cnn_forward.1
$region0: #{cnn_forward.1}
  #allocation0 [shape = 'u32[]', space=smem, size = 0x4, offset = 0x4, fixed_abs, tag = 'smem constant byte address 0x4 - core index']
  #allocation1 [shape = 'u32[144,128]{1,0:T(1,128)}', space=vmem, size = 0x12000, scoped, tag = 'internal scratch']
  #allocation2 [shape = 'f32[40,80]{1,0:T(8,128)}', space=vmem, size = 0x5000, scoped, tag = 'scratch operand']
  #allocation3 [shape = 'f32[40,64]{1,0:T(8,128)}', space=vmem, size = 0x5000, scoped, tag = 'scratch operand']
  #allocation4 [shape = 'f32[20,64]{1,0:T(8,128)}', space=vmem, size = 0x3000, scoped, tag = 'scratch operand']
  #allocation5 [shape = 'f32[12,320]{1,0:T(8,128)}', space=vmem, size = 0x6000, scoped, tag = 'scratch operand']
  #allocation6 [shape = 'f32[12,128]{1,0:T(8,128)}', space=vmem, size = 0x2000, scoped, tag = 'scratch operand']
  #allocation7 [shape = 'f32[6,128]{1,0:T(8,128)}', space=vmem, size = 0x1000, scoped, tag = 'scratch operand']
  #allocation8 [shape = 'f32[2,384]{1,0:T(2,128)}', space=vmem, size = 0xc00, scoped, tag = 'scratch operand']
  %s0 = inlined_call_operand.vmem [shape: f32[48,16], index: 0, kind: input, shape index: {}]
  %s1 = inlined_call_operand.vmem [shape: f32[80,64], index: 1, kind: input, shape index: {}]
  %s2 = inlined_call_operand.vmem [shape: f32[1,64], index: 2, kind: input, shape index: {}]
  %s3 = inlined_call_operand.vmem [shape: f32[1,64], index: 3, kind: input, shape index: {}]
  %s4 = inlined_call_operand.vmem [shape: f32[320,128], index: 4, kind: input, shape index: {}]
  %s5 = inlined_call_operand.vmem [shape: f32[1,128], index: 5, kind: input, shape index: {}]
  %s6 = inlined_call_operand.vmem [shape: f32[1,128], index: 6, kind: input, shape index: {}]
  %s7 = inlined_call_operand.vmem [shape: f32[384,64], index: 7, kind: input, shape index: {}]
  %s8 = inlined_call_operand.vmem [shape: f32[1,64], index: 8, kind: input, shape index: {}]
  %s9 = inlined_call_operand.vmem [shape: f32[64,32], index: 9, kind: input, shape index: {}]
  %s10 = inlined_call_operand.vmem [shape: f32[1,32], index: 10, kind: input, shape index: {}]
  %s11 = inlined_call_operand.vmem [shape: f32[32,2], index: 11, kind: input, shape index: {}]
  %s12 = inlined_call_operand.vmem [shape: f32[1,2], index: 12, kind: input, shape index: {}]
  %s13 = inlined_call_operand.hbm [shape: f32[2,2], index: 13, kind: output, shape index: {}]
  %s14 = sld [smem:[#allocation0]]
  $region62: #{cnn_forward.1} parent=0
    _
  %s16 = ssub.s32 1, %s14
  %s17 = scalar_select 0, %s16, %s14
  $region1: #{cnn_forward.1} parent=0
    #allocation9 [shape = 'u8[1024]{0}', space=vmem, size = 0x400, scoped, tag = 'output window, operand 0, single buffered']
    #allocation10 [shape = 's32[1]{0}', space=sflag, size = 0x4, scoped, tag = 'scoped memory for cnn_forward.1']
    %18 = vsyncpa [#allocation10], 0
    // Predicated region
    $region2: #{cnn_forward.1} parent=1 // pred_check
      _
    $region3: #{cnn_forward.1} parent=1 // pred_check_branch
      %20 = sbr.rel (0) target = $region5
    $region4: #{cnn_forward.1} parent=1 // pred_region
      _
    $region5: #{cnn_forward.1} parent=1 // pred_fallthru
      _
    // Predicated region
    $region6: #{cnn_forward.1} parent=1 // pred_check
      _
    $region7: #{cnn_forward.1} parent=1 // pred_check_branch
      %22 = sbr.rel (0) target = $region9
    $region8: #{cnn_forward.1} parent=1 // pred_region
      _
    $region9: #{cnn_forward.1} parent=1 // pred_fallthru
      _
    // Predicated region
    $region10: #{cnn_forward.1} parent=1 // pred_check
      _
    $region11: #{cnn_forward.1} parent=1 // pred_check_branch
      %24 = sbr.rel (0) target = $region13
    $region12: #{cnn_forward.1} parent=1 // pred_region
      _
    $region13: #{cnn_forward.1} parent=1 // pred_fallthru
      _
    // Predicated region
    $region14: #{cnn_forward.1} parent=1 // pred_check
      _
    $region15: #{cnn_forward.1} parent=1 // pred_check_branch
      %26 = sbr.rel (0) target = $region17
    $region16: #{cnn_forward.1} parent=1 // pred_region
      _
    $region17: #{cnn_forward.1} parent=1 // pred_fallthru
      _
    // Predicated region
    $region18: #{cnn_forward.1} parent=1 // pred_check
      _
    $region19: #{cnn_forward.1} parent=1 // pred_check_branch
      %28 = sbr.rel (0) target = $region21
    $region20: #{cnn_forward.1} parent=1 // pred_region
      _
    $region21: #{cnn_forward.1} parent=1 // pred_fallthru
      _
    // Predicated region
    $region22: #{cnn_forward.1} parent=1 // pred_check
      _
    $region23: #{cnn_forward.1} parent=1 // pred_check_branch
      %30 = sbr.rel (0) target = $region25
    $region24: #{cnn_forward.1} parent=1 // pred_region
      _
    $region25: #{cnn_forward.1} parent=1 // pred_fallthru
      _
    // Predicated region
    $region26: #{cnn_forward.1} parent=1 // pred_check
      _
    $region27: #{cnn_forward.1} parent=1 // pred_check_branch
      %32 = sbr.rel (0) target = $region29
    $region28: #{cnn_forward.1} parent=1 // pred_region
      _
    $region29: #{cnn_forward.1} parent=1 // pred_fallthru
      _
    // Predicated region
    $region30: #{cnn_forward.1} parent=1 // pred_check
      _
    $region31: #{cnn_forward.1} parent=1 // pred_check_branch
      %34 = sbr.rel (0) target = $region33
    $region32: #{cnn_forward.1} parent=1 // pred_region
      _
    $region33: #{cnn_forward.1} parent=1 // pred_fallthru
      _
    // Predicated region
    $region34: #{cnn_forward.1} parent=1 // pred_check
      _
    $region35: #{cnn_forward.1} parent=1 // pred_check_branch
      %36 = sbr.rel (0) target = $region37
    $region36: #{cnn_forward.1} parent=1 // pred_region
      _
    $region37: #{cnn_forward.1} parent=1 // pred_fallthru
      _
    // Predicated region
    $region38: #{cnn_forward.1} parent=1 // pred_check
      _
    $region39: #{cnn_forward.1} parent=1 // pred_check_branch
      %38 = sbr.rel (0) target = $region41
    $region40: #{cnn_forward.1} parent=1 // pred_region
      _
    $region41: #{cnn_forward.1} parent=1 // pred_fallthru
      _
    // Predicated region
    $region42: #{cnn_forward.1} parent=1 // pred_check
      _
    $region43: #{cnn_forward.1} parent=1 // pred_check_branch
      %40 = sbr.rel (0) target = $region45
    $region44: #{cnn_forward.1} parent=1 // pred_region
      _
    $region45: #{cnn_forward.1} parent=1 // pred_fallthru
      _
    // Predicated region
    $region46: #{cnn_forward.1} parent=1 // pred_check
      _
    $region47: #{cnn_forward.1} parent=1 // pred_check_branch
      %42 = sbr.rel (0) target = $region49
    $region48: #{cnn_forward.1} parent=1 // pred_region
      _
    $region49: #{cnn_forward.1} parent=1 // pred_fallthru
      _
    // Predicated region
    $region50: #{cnn_forward.1} parent=1 // pred_check
      _
    $region51: #{cnn_forward.1} parent=1 // pred_check_branch
      %44 = sbr.rel (0) target = $region53
    $region52: #{cnn_forward.1} parent=1 // pred_region
      _
    $region53: #{cnn_forward.1} parent=1 // pred_fallthru
      _
    %v45 = vld [vmem:[%s0] ss:$2 sm:$0xff]
    %s46 = scalar_lea.vmem %s0, 16
    %v47 = vld [vmem:[%s46] ss:$2 sm:$0x3]
    %vm48 = vcmask 130048
    %49 = vst.msk [vmem:[#allocation2] sm:$0xff] %vm48, %v45
    %vm50 = vcmask 123904
    %51 = vst.msk [vmem:[#allocation2 + $0x8] sm:$0x3] %vm50, %v47
    %s52 = scalar_lea.vmem %s0, 1
    %v53 = vld [vmem:[%s52] ss:$2 sm:$0xff]
    %s54 = scalar_lea.vmem %s0, 17
    %v55 = vld [vmem:[%s54] ss:$2 sm:$0x3]
    %58 = vrot.lane.b32.xlu0 %v53, 16
    %v59 = vpop.permute.xlu0 %58
    %60 = vrot.lane.b32.xlu0 %v55, 16
    %v61 = vpop.permute.xlu0 %60
    %vm64 = vcmask 261248
    %65 = vst.msk [vmem:[#allocation2] sm:$0xff] %vm64, %v59
    %vm66 = vcmask 255104
    %67 = vst.msk [vmem:[#allocation2 + $0x8] sm:$0x3] %vm66, %v61
    %s68 = scalar_lea.vmem %s0, 2
    %v69 = vld [vmem:[%s68] ss:$2 sm:$0xff]
    %s70 = scalar_lea.vmem %s0, 18
    %v71 = vld [vmem:[%s70] ss:$2 sm:$0x3]
    %74 = vrot.lane.b32.xlu0 %v69, 32
    %v75 = vpop.permute.xlu0 %74
    %76 = vrot.lane.b32.xlu0 %v71, 32
    %v77 = vpop.permute.xlu0 %76
    %vm80 = vcmask 392448
    %81 = vst.msk [vmem:[#allocation2] sm:$0xff] %vm80, %v75
    %vm82 = vcmask 386304
    %83 = vst.msk [vmem:[#allocation2 + $0x8] sm:$0x3] %vm82, %v77
    %s84 = scalar_lea.vmem %s0, 3
    %v85 = vld [vmem:[%s84] ss:$2 sm:$0xff]
    %s86 = scalar_lea.vmem %s0, 19
    %v87 = vld [vmem:[%s86] ss:$2 sm:$0x3]
    %90 = vrot.lane.b32.xlu0 %v85, 48
    %v91 = vpop.permute.xlu0 %90
    %92 = vrot.lane.b32.xlu0 %v87, 48
    %v93 = vpop.permute.xlu0 %92
    %vm96 = vcmask 523648
    %97 = vst.msk [vmem:[#allocation2] sm:$0xff] %vm96, %v91
    %vm98 = vcmask 517504
    %99 = vst.msk [vmem:[#allocation2 + $0x8] sm:$0x3] %vm98, %v93
    %s100 = scalar_lea.vmem %s0, 4
    %v101 = vld [vmem:[%s100] ss:$2 sm:$0xff]
    %s102 = scalar_lea.vmem %s0, 20
    %v103 = vld [vmem:[%s102] ss:$2 sm:$0x3]
    %106 = vrot.lane.b32.xlu0 %v101, 64
    %v107 = vpop.permute.xlu0 %106
    %108 = vrot.lane.b32.xlu0 %v103, 64
    %v109 = vpop.permute.xlu0 %108
    %vm112 = vcmask 654848
    %113 = vst.msk [vmem:[#allocation2] sm:$0xff] %vm112, %v107
    %vm114 = vcmask 648704
    %115 = vst.msk [vmem:[#allocation2 + $0x8] sm:$0x3] %vm114, %v109
    %v116 = vld [vmem:[%s52] ss:$2 sm:$0xff]
    %v117 = vld [vmem:[%s54] ss:$2 sm:$0x3]
    %118 = vst.msk [vmem:[#allocation2 + $0xa] sm:$0xff] %vm48, %v116
    %119 = vst.msk [vmem:[#allocation2 + $0x12] sm:$0x3] %vm50, %v117
    %v120 = vld [vmem:[%s68] ss:$2 sm:$0xff]
    %v121 = vld [vmem:[%s70] ss:$2 sm:$0x3]
    %124 = vrot.lane.b32.xlu0 %v120, 16
    %v125 = vpop.permute.xlu0 %124
    %126 = vrot.lane.b32.xlu0 %v121, 16
    %v127 = vpop.permute.xlu0 %126
    %130 = vst.msk [vmem:[#allocation2 + $0xa] sm:$0xff] %vm64, %v125
    %131 = vst.msk [vmem:[#allocation2 + $0x12] sm:$0x3] %vm66, %v127
    %v132 = vld [vmem:[%s84] ss:$2 sm:$0xff]
    %v133 = vld [vmem:[%s86] ss:$2 sm:$0x3]
    %136 = vrot.lane.b32.xlu0 %v132, 32
    %v137 = vpop.permute.xlu0 %136
    %138 = vrot.lane.b32.xlu0 %v133, 32
    %v139 = vpop.permute.xlu0 %138
    %142 = vst.msk [vmem:[#allocation2 + $0xa] sm:$0xff] %vm80, %v137
    %143 = vst.msk [vmem:[#allocation2 + $0x12] sm:$0x3] %vm82, %v139
    %v144 = vld [vmem:[%s100] ss:$2 sm:$0xff]
    %v145 = vld [vmem:[%s102] ss:$2 sm:$0x3]
    %148 = vrot.lane.b32.xlu0 %v144, 48
    %v149 = vpop.permute.xlu0 %148
    %150 = vrot.lane.b32.xlu0 %v145, 48
    %v151 = vpop.permute.xlu0 %150
    %154 = vst.msk [vmem:[#allocation2 + $0xa] sm:$0xff] %vm96, %v149
    %155 = vst.msk [vmem:[#allocation2 + $0x12] sm:$0x3] %vm98, %v151
    %s156 = scalar_lea.vmem %s0, 5
    %v157 = vld [vmem:[%s156] ss:$2 sm:$0xff]
    %s158 = scalar_lea.vmem %s0, 21
    %v159 = vld [vmem:[%s158] ss:$2 sm:$0x3]
    %162 = vrot.lane.b32.xlu0 %v157, 64
    %v163 = vpop.permute.xlu0 %162
    %164 = vrot.lane.b32.xlu0 %v159, 64
    %v165 = vpop.permute.xlu0 %164
    %168 = vst.msk [vmem:[#allocation2 + $0xa] sm:$0xff] %vm112, %v163
    %169 = vst.msk [vmem:[#allocation2 + $0x12] sm:$0x3] %vm114, %v165
    %s170 = scalar_lea.vmem %s0, 24
    %v171 = vld [vmem:[%s170] ss:$2 sm:$0xff]
    %s172 = scalar_lea.vmem %s0, 40
    %v173 = vld [vmem:[%s172] ss:$2 sm:$0x3]
    %174 = vst.msk [vmem:[#allocation2 + $0x14] sm:$0xff] %vm48, %v171
    %175 = vst.msk [vmem:[#allocation2 + $0x1c] sm:$0x3] %vm50, %v173
    %s176 = scalar_lea.vmem %s0, 25
    %v177 = vld [vmem:[%s176] ss:$2 sm:$0xff]
    %s178 = scalar_lea.vmem %s0, 41
    %v179 = vld [vmem:[%s178] ss:$2 sm:$0x3]
    %182 = vrot.lane.b32.xlu0 %v177, 16
    %v183 = vpop.permute.xlu0 %182
    %184 = vrot.lane.b32.xlu0 %v179, 16
    %v185 = vpop.permute.xlu0 %184
    %188 = vst.msk [vmem:[#allocation2 + $0x14] sm:$0xff] %vm64, %v183
    %189 = vst.msk [vmem:[#allocation2 + $0x1c] sm:$0x3] %vm66, %v185
    %s190 = scalar_lea.vmem %s0, 26
    %v191 = vld [vmem:[%s190] ss:$2 sm:$0xff]
    %s192 = scalar_lea.vmem %s0, 42
    %v193 = vld [vmem:[%s192] ss:$2 sm:$0x3]
    %196 = vrot.lane.b32.xlu0 %v191, 32
    %v197 = vpop.permute.xlu0 %196
    %198 = vrot.lane.b32.xlu0 %v193, 32
    %v199 = vpop.permute.xlu0 %198
    %202 = vst.msk [vmem:[#allocation2 + $0x14] sm:$0xff] %vm80, %v197
    %203 = vst.msk [vmem:[#allocation2 + $0x1c] sm:$0x3] %vm82, %v199
    %s204 = scalar_lea.vmem %s0, 27
    %v205 = vld [vmem:[%s204] ss:$2 sm:$0xff]
    %s206 = scalar_lea.vmem %s0, 43
    %v207 = vld [vmem:[%s206] ss:$2 sm:$0x3]
    %210 = vrot.lane.b32.xlu0 %v205, 48
    %v211 = vpop.permute.xlu0 %210
    %212 = vrot.lane.b32.xlu0 %v207, 48
    %v213 = vpop.permute.xlu0 %212
    %216 = vst.msk [vmem:[#allocation2 + $0x14] sm:$0xff] %vm96, %v211
    %217 = vst.msk [vmem:[#allocation2 + $0x1c] sm:$0x3] %vm98, %v213
    %s218 = scalar_lea.vmem %s0, 28
    %v219 = vld [vmem:[%s218] ss:$2 sm:$0xff]
    %s220 = scalar_lea.vmem %s0, 44
    %v221 = vld [vmem:[%s220] ss:$2 sm:$0x3]
    %224 = vrot.lane.b32.xlu0 %v219, 64
    %v225 = vpop.permute.xlu0 %224
    %226 = vrot.lane.b32.xlu0 %v221, 64
    %v227 = vpop.permute.xlu0 %226
    %230 = vst.msk [vmem:[#allocation2 + $0x14] sm:$0xff] %vm112, %v225
    %231 = vst.msk [vmem:[#allocation2 + $0x1c] sm:$0x3] %vm114, %v227
    %v232 = vld [vmem:[%s176] ss:$2 sm:$0xff]
    %v233 = vld [vmem:[%s178] ss:$2 sm:$0x3]
    %234 = vst.msk [vmem:[#allocation2 + $0x1e] sm:$0xff] %vm48, %v232
    %235 = vst.msk [vmem:[#allocation2 + $0x26] sm:$0x3] %vm50, %v233
    %v236 = vld [vmem:[%s190] ss:$2 sm:$0xff]
    %v237 = vld [vmem:[%s192] ss:$2 sm:$0x3]
    %240 = vrot.lane.b32.xlu0 %v236, 16
    %v241 = vpop.permute.xlu0 %240
    %242 = vrot.lane.b32.xlu0 %v237, 16
    %v243 = vpop.permute.xlu0 %242
    %246 = vst.msk [vmem:[#allocation2 + $0x1e] sm:$0xff] %vm64, %v241
    %247 = vst.msk [vmem:[#allocation2 + $0x26] sm:$0x3] %vm66, %v243
    %v248 = vld [vmem:[%s204] ss:$2 sm:$0xff]
    %v249 = vld [vmem:[%s206] ss:$2 sm:$0x3]
    %252 = vrot.lane.b32.xlu0 %v248, 32
    %v253 = vpop.permute.xlu0 %252
    %254 = vrot.lane.b32.xlu0 %v249, 32
    %v255 = vpop.permute.xlu0 %254
    %258 = vst.msk [vmem:[#allocation2 + $0x1e] sm:$0xff] %vm80, %v253
    %259 = vst.msk [vmem:[#allocation2 + $0x26] sm:$0x3] %vm82, %v255
    %v260 = vld [vmem:[%s218] ss:$2 sm:$0xff]
    %v261 = vld [vmem:[%s220] ss:$2 sm:$0x3]
    %264 = vrot.lane.b32.xlu0 %v260, 48
    %v265 = vpop.permute.xlu0 %264
    %266 = vrot.lane.b32.xlu0 %v261, 48
    %v267 = vpop.permute.xlu0 %266
    %270 = vst.msk [vmem:[#allocation2 + $0x1e] sm:$0xff] %vm96, %v265
    %271 = vst.msk [vmem:[#allocation2 + $0x26] sm:$0x3] %vm98, %v267
    %s272 = scalar_lea.vmem %s0, 29
    %v273 = vld [vmem:[%s272] ss:$2 sm:$0xff]
    %s274 = scalar_lea.vmem %s0, 45
    %v275 = vld [vmem:[%s274] ss:$2 sm:$0x3]
    %278 = vrot.lane.b32.xlu0 %v273, 64
    %v279 = vpop.permute.xlu0 %278
    %280 = vrot.lane.b32.xlu0 %v275, 64
    %v281 = vpop.permute.xlu0 %280
    %284 = vst.msk [vmem:[#allocation2 + $0x1e] sm:$0xff] %vm112, %v279
    %285 = vst.msk [vmem:[#allocation2 + $0x26] sm:$0x3] %vm114, %v281
    %v286 = vld [vmem:[#allocation2] sm:$0xff]
    %v287 = vld [vmem:[#allocation2 + $0x8] sm:$0xff]
    %v288 = vld [vmem:[#allocation2 + $0x10] sm:$0xff]
    %v289 = vld [vmem:[#allocation2 + $0x18] sm:$0xff]
    %v290 = vld [vmem:[#allocation2 + $0x20] sm:$0xff]
    %v291 = vld [vmem:[%s1] sm:$0xff]
    %v292 = vld [vmem:[%s1 + $0x8] sm:$0xff]
    %v293 = vld [vmem:[%s1 + $0x10] sm:$0xff]
    %v294 = vld [vmem:[%s1 + $0x18] sm:$0xff]
    %v295 = vld [vmem:[%s1 + $0x20] sm:$0xff]
    %v296 = vld [vmem:[%s1 + $0x28] sm:$0xff]
    %v297 = vld [vmem:[%s1 + $0x30] sm:$0xff]
    %v298 = vld [vmem:[%s1 + $0x38] sm:$0xff]
    %v299 = vld [vmem:[%s1 + $0x40] sm:$0xff]
    %v300 = vld [vmem:[%s1 + $0x48] sm:$0xff]
    %vm301 = vcmask 654336
    %v303 = vsel %vm301, %v286, 0
    %v306 = vsel %vm301, %v287, 0
    %v309 = vsel %vm301, %v288, 0
    %v312 = vsel %vm301, %v289, 0
    %v315 = vsel %vm301, %v290, 0
    %317 = vmatprep.subr.mxu0 0.0
    %318 = vmatpush1.msra.mxu0 0.0
    %319 = vmatprep.subr.mxu0 0.0
    %320 = vmatpush1.msra.mxu0 0.0
    %321 = vmatprep.subr.mxu0 0.0
    %322 = vmatpush1.msra.mxu0 0.0
    %323 = vmatprep.subr.mxu0 0.0
    %324 = vmatpush1.msra.mxu0 0.0
    %325 = vmatprep.subr.mxu0 0.0
    %326 = vmatpush1.msra.mxu0 0.0
    %327 = vmatprep.subr.mxu0 0.0
    %328 = vmatpush1.msra.mxu0 0.0
    %329 = vmatprep.subr.mxu0 0.0
    %330 = vmatpush1.msra.mxu0 %v300
    %331 = vmatprep.subr.mxu0 0.0
    %332 = vmatpush1.msra.mxu0 %v299
    %333 = vmatprep.subr.mxu0 0.0
    %334 = vmatpush1.msra.mxu0 %v298
    %335 = vmatprep.subr.mxu0 0.0
    %336 = vmatpush1.msra.mxu0 %v297
    %337 = vmatprep.subr.mxu0 0.0
    %338 = vmatpush1.msra.mxu0 %v296
    %339 = vmatprep.subr.mxu0 0.0
    %340 = vmatpush1.msra.mxu0 %v295
    %341 = vmatprep.subr.mxu0 0.0
    %342 = vmatpush1.msra.mxu0 %v294
    %343 = vmatprep.subr.mxu0 0.0
    %344 = vmatpush1.msra.mxu0 %v293
    %345 = vmatprep.subr.mxu0 0.0
    %346 = vmatpush1.msra.mxu0 %v292
    %347 = vmatprep.subr.mxu0 0.0
    %348 = vmatpush1.msra.mxu0 %v291
    %349 = vmatprep.subr.mxu0 0.0
    %350 = vmatpush2.msra.mxu0 0.0
    %351 = vmatprep.subr.mxu0 0.0
    %352 = vmatpush2.msra.mxu0 0.0
    %353 = vmatprep.subr.mxu0 0.0
    %354 = vmatpush2.msra.mxu0 0.0
    %355 = vmatprep.subr.mxu0 0.0
    %356 = vmatpush2.msra.mxu0 0.0
    %357 = vmatprep.subr.mxu0 0.0
    %358 = vmatpush2.msra.mxu0 0.0
    %359 = vmatprep.subr.mxu0 0.0
    %360 = vmatpush2.msra.mxu0 0.0
    %361 = vmatprep.subr.mxu0 0.0
    %362 = vmatpush2.msra.mxu0 0.0
    %363 = vmatprep.subr.mxu0 0.0
    %364 = vmatpush2.msra.mxu0 0.0
    %365 = vmatprep.subr.mxu0 0.0
    %366 = vmatpush2.msra.mxu0 0.0
    %367 = vmatprep.subr.mxu0 0.0
    %368 = vmatpush2.msra.mxu0 0.0
    %369 = vmatprep.subr.mxu0 0.0
    %370 = vmatpush2.msra.mxu0 0.0
    %371 = vmatprep.subr.mxu0 0.0
    %372 = vmatpush2.msra.mxu0 0.0
    %373 = vmatprep.subr.mxu0 0.0
    %374 = vmatpush2.msra.mxu0 0.0
    %375 = vmatprep.subr.mxu0 0.0
    %376 = vmatpush2.msra.mxu0 0.0
    %377 = vmatprep.subr.mxu0 0.0
    %378 = vmatpush2.msra.mxu0 0.0
    %379 = vmatprep.subr.mxu0 0.0
    %380 = vmatpush2.msra.mxu0 0.0
    %381 = vmatprep.mubr.f32.mxu0 0.0
    %382 = vmatmul.mubr.f32.gmra.mxu0 %v303
    %v383 = vpop.f32.mrf.mxu0
    %v384 = vadd.f32 0.0, %v383
    %v385 = vpop.f32.mrf.mxu0
    %386 = vmatprep.mubr.f32.mxu0 0.0
    %387 = vmatmul.mubr.f32.gmra.mxu0 %v306
    %v388 = vpop.f32.mrf.mxu0
    %v389 = vadd.f32 0.0, %v388
    %v390 = vpop.f32.mrf.mxu0
    %391 = vmatprep.mubr.f32.mxu0 0.0
    %392 = vmatmul.mubr.f32.gmra.mxu0 %v309
    %v393 = vpop.f32.mrf.mxu0
    %v394 = vadd.f32 0.0, %v393
    %v395 = vpop.f32.mrf.mxu0
    %396 = vmatprep.mubr.f32.mxu0 0.0
    %397 = vmatmul.mubr.f32.gmra.mxu0 %v312
    %v398 = vpop.f32.mrf.mxu0
    %v399 = vadd.f32 0.0, %v398
    %v400 = vpop.f32.mrf.mxu0
    %401 = vmatprep.mubr.f32.mxu0 0.0
    %402 = vmatmul.mubr.f32.gmra.mxu0 %v315
    %v403 = vpop.f32.mrf.mxu0
    %v404 = vadd.f32 0.0, %v403
    %v405 = vpop.f32.mrf.mxu0
    %406 = vdwg.mxu0
    %v407 = vld [vmem:[%s2] sm:$0x1]
    %v409 = vlaneseq
    %v410 = vshrl.u32 %v409, 7
    %v411 = vsub.s32 0, %v410
    %v412 = vrot.slane %v407, %v411
    %v414 = vmul.f32 %v384, %v412
    %v415 = vmul.f32 %v389, %v412
    %v416 = vmul.f32 %v394, %v412
    %v417 = vmul.f32 %v399, %v412
    %v418 = vmul.f32 %v404, %v412
    %v419 = vld [vmem:[%s3] sm:$0x1]
    %v421 = vlaneseq
    %v422 = vshrl.u32 %v421, 7
    %v423 = vsub.s32 0, %v422
    %v424 = vrot.slane %v419, %v423
    %v426 = vadd.f32 %v414, %v424
    %v427 = vadd.f32 %v415, %v424
    %v428 = vadd.f32 %v416, %v424
    %v429 = vadd.f32 %v417, %v424
    %v430 = vadd.f32 %v418, %v424
    %v431 = vmax.f32 %v426, 0.0
    %v432 = vmax.f32 %v427, 0.0
    %v433 = vmax.f32 %v428, 0.0
    %v434 = vmax.f32 %v429, 0.0
    %v435 = vmax.f32 %v430, 0.0
    %vm436 = vcmask 523264
    %437 = vst.msk [vmem:[#allocation3] sm:$0xff] %vm436, %v431
    %438 = vst.msk [vmem:[#allocation3 + $0x8] sm:$0xff] %vm436, %v432
    %439 = vst.msk [vmem:[#allocation3 + $0x10] sm:$0xff] %vm436, %v433
    %440 = vst.msk [vmem:[#allocation3 + $0x18] sm:$0xff] %vm436, %v434
    %441 = vst.msk [vmem:[#allocation3 + $0x20] sm:$0xff] %vm436, %v435
    %v442 = vld [vmem:[#allocation3] sm:$0xff]
    %v443 = vld [vmem:[#allocation3 + $0x8] sm:$0x3]
    %v444 = vld [vmem:[#allocation3 + $0xa] sm:$0xff]
    %v445 = vld [vmem:[#allocation3 + $0x12] sm:$0x3]
    %v446 = vmax.f32 %v442, %v444
    %v447 = vmax.f32 %v443, %v445
    %448 = vst.msk [vmem:[#allocation4] sm:$0xff] %vm436, %v446
    %vm449 = vcmask 517120
    %450 = vst.msk [vmem:[#allocation4 + $0x8] sm:$0x3] %vm449, %v447
    %v451 = vld [vmem:[#allocation3 + $0x14] sm:$0xff]
    %v452 = vld [vmem:[#allocation3 + $0x1c] sm:$0x3]
    %v453 = vld [vmem:[#allocation3 + $0x1e] sm:$0xff]
    %v454 = vld [vmem:[#allocation3 + $0x26] sm:$0x3]
    %v455 = vmax.f32 %v451, %v453
    %v456 = vmax.f32 %v452, %v454
    %457 = vst.msk [vmem:[#allocation4 + $0xa] sm:$0xff] %vm436, %v455
    %458 = vst.msk [vmem:[#allocation4 + $0x12] sm:$0x3] %vm449, %v456
    %v459 = vld [vmem:[#allocation4] ss:$2 sm:$0x7]
    %vm460 = vcmask 518144
    %461 = vst.msk [vmem:[#allocation5] sm:$0x7] %vm460, %v459
    %s462 = scalar_lea.vmem [#allocation4], 1
    %v463 = vld [vmem:[%s462] ss:$2 sm:$0x7]
    %465 = vrot.lane.b32.xlu0 %v463, 64
    %v466 = vpop.permute.xlu0 %465
    %vm468 = vcmask 1042944
    %469 = vst.msk [vmem:[#allocation5] sm:$0x7] %vm468, %v466
    %s470 = scalar_lea.vmem [#allocation4], 2
    %v471 = vld [vmem:[%s470] ss:$2 sm:$0x7]
    %472 = vst.msk [vmem:[#allocation5 + $0x8] sm:$0x7] %vm460, %v471
    %s473 = scalar_lea.vmem [#allocation4], 3
    %v474 = vld [vmem:[%s473] ss:$2 sm:$0x7]
    %476 = vrot.lane.b32.xlu0 %v474, 64
    %v477 = vpop.permute.xlu0 %476
    %479 = vst.msk [vmem:[#allocation5 + $0x8] sm:$0x7] %vm468, %v477
    %s480 = scalar_lea.vmem [#allocation4], 4
    %v481 = vld [vmem:[%s480] ss:$2 sm:$0x7]
    %482 = vst.msk [vmem:[#allocation5 + $0x10] sm:$0x7] %vm460, %v481
    %v483 = vld [vmem:[%s462] ss:$2 sm:$0x7]
    %v485 = vrot.slane %v483, 5
    %vm487 = vcmask 521219
    %488 = vst.msk [vmem:[#allocation5] sm:$0x38] %vm487, %v485
    %v489 = vld [vmem:[%s470] ss:$2 sm:$0x7]
    %v491 = vrot.slane %v489, 5
    %492 = vrot.lane.b32.xlu0 %v491, 64
    %v493 = vpop.permute.xlu0 %492
    %vm495 = vcmask 1046019
    %496 = vst.msk [vmem:[#allocation5] sm:$0x38] %vm495, %v493
    %v497 = vld [vmem:[%s473] ss:$2 sm:$0x7]
    %v499 = vrot.slane %v497, 5
    %501 = vst.msk [vmem:[#allocation5 + $0x8] sm:$0x38] %vm487, %v499
    %v502 = vld [vmem:[%s480] ss:$2 sm:$0x7]
    %v504 = vrot.slane %v502, 5
    %505 = vrot.lane.b32.xlu0 %v504, 64
    %v506 = vpop.permute.xlu0 %505
    %508 = vst.msk [vmem:[#allocation5 + $0x8] sm:$0x38] %vm495, %v506
    %s509 = scalar_lea.vmem [#allocation4], 5
    %v510 = vld [vmem:[%s509] ss:$2 sm:$0x7]
    %v512 = vrot.slane %v510, 5
    %514 = vst.msk [vmem:[#allocation5 + $0x10] sm:$0x38] %vm487, %v512
    %s515 = scalar_lea.vmem [#allocation4], 10
    %v516 = vld [vmem:[%s515] ss:$2 sm:$0x7]
    %v518 = vrot.slane %v516, 2
    %vm520 = vcmask 523270
    %521 = vst.msk [vmem:[#allocation5] sm:$0xc0] %vm520, %v518
    %vm522 = vcmask 516096
    %523 = vst.msk [vmem:[#allocation5 + $0x18] sm:$0x1] %vm522, %v518
    %s524 = scalar_lea.vmem [#allocation4], 11
    %v525 = vld [vmem:[%s524] ss:$2 sm:$0x7]
    %v527 = vrot.slane %v525, 2
    %528 = vrot.lane.b32.xlu0 %v527, 64
    %v529 = vpop.permute.xlu0 %528
    %vm531 = vcmask 1048070
    %532 = vst.msk [vmem:[#allocation5] sm:$0xc0] %vm531, %v529
    %vm533 = vcmask 1040896
    %534 = vst.msk [vmem:[#allocation5 + $0x18] sm:$0x1] %vm533, %v529
    %s535 = scalar_lea.vmem [#allocation4], 12
    %v536 = vld [vmem:[%s535] ss:$2 sm:$0x7]
    %v538 = vrot.slane %v536, 2
    %540 = vst.msk [vmem:[#allocation5 + $0x8] sm:$0xc0] %vm520, %v538
    %541 = vst.msk [vmem:[#allocation5 + $0x20] sm:$0x1] %vm522, %v538
    %s542 = scalar_lea.vmem [#allocation4], 13
    %v543 = vld [vmem:[%s542] ss:$2 sm:$0x7]
    %v545 = vrot.slane %v543, 2
    %546 = vrot.lane.b32.xlu0 %v545, 64
    %v547 = vpop.permute.xlu0 %546
    %549 = vst.msk [vmem:[#allocation5 + $0x8] sm:$0xc0] %vm531, %v547
    %550 = vst.msk [vmem:[#allocation5 + $0x20] sm:$0x1] %vm533, %v547
    %s551 = scalar_lea.vmem [#allocation4], 14
    %v552 = vld [vmem:[%s551] ss:$2 sm:$0x7]
    %v554 = vrot.slane %v552, 2
    %556 = vst.msk [vmem:[#allocation5 + $0x10] sm:$0xc0] %vm520, %v554
    %557 = vst.msk [vmem:[#allocation5 + $0x28] sm:$0x1] %vm522, %v554
    %v558 = vld [vmem:[%s524] ss:$2 sm:$0x7]
    %v560 = vrot.slane %v558, 7
    %vm562 = vcmask 519169
    %563 = vst.msk [vmem:[#allocation5 + $0x18] sm:$0xe] %vm562, %v560
    %v564 = vld [vmem:[%s535] ss:$2 sm:$0x7]
    %v566 = vrot.slane %v564, 7
    %567 = vrot.lane.b32.xlu0 %v566, 64
    %v568 = vpop.permute.xlu0 %567
    %vm570 = vcmask 1043969
    %571 = vst.msk [vmem:[#allocation5 + $0x18] sm:$0xe] %vm570, %v568
    %v572 = vld [vmem:[%s542] ss:$2 sm:$0x7]
    %v574 = vrot.slane %v572, 7
    %576 = vst.msk [vmem:[#allocation5 + $0x20] sm:$0xe] %vm562, %v574
    %v577 = vld [vmem:[%s551] ss:$2 sm:$0x7]
    %v579 = vrot.slane %v577, 7
    %580 = vrot.lane.b32.xlu0 %v579, 64
    %v581 = vpop.permute.xlu0 %580
    %583 = vst.msk [vmem:[#allocation5 + $0x20] sm:$0xe] %vm570, %v581
    %s584 = scalar_lea.vmem [#allocation4], 15
    %v585 = vld [vmem:[%s584] ss:$2 sm:$0x7]
    %v587 = vrot.slane %v585, 7
    %589 = vst.msk [vmem:[#allocation5 + $0x28] sm:$0xe] %vm562, %v587
    %v590 = vld [vmem:[#allocation5] sm:$0xff]
    %v591 = vld [vmem:[#allocation5 + $0x8] sm:$0xff]
    %v592 = vld [vmem:[#allocation5 + $0x10] sm:$0xff]
    %v593 = vld [vmem:[#allocation5 + $0x18] sm:$0xf]
    %v594 = vld [vmem:[#allocation5 + $0x20] sm:$0xf]
    %v595 = vld [vmem:[#allocation5 + $0x28] sm:$0xf]
    %v596 = vld [vmem:[%s4] sm:$0xff]
    %v597 = vld [vmem:[%s4 + $0x8] sm:$0xff]
    %v598 = vld [vmem:[%s4 + $0x10] sm:$0xff]
    %v599 = vld [vmem:[%s4 + $0x18] sm:$0xff]
    %v600 = vld [vmem:[%s4 + $0x20] sm:$0xff]
    %v601 = vld [vmem:[%s4 + $0x28] sm:$0xff]
    %v602 = vld [vmem:[%s4 + $0x30] sm:$0xff]
    %v603 = vld [vmem:[%s4 + $0x38] sm:$0xff]
    %v604 = vld [vmem:[%s4 + $0x40] sm:$0xff]
    %v605 = vld [vmem:[%s4 + $0x48] sm:$0xff]
    %v606 = vld [vmem:[%s4 + $0x50] sm:$0xff]
    %v607 = vld [vmem:[%s4 + $0x58] sm:$0xff]
    %v608 = vld [vmem:[%s4 + $0x60] sm:$0xff]
    %v609 = vld [vmem:[%s4 + $0x68] sm:$0xff]
    %v610 = vld [vmem:[%s4 + $0x70] sm:$0xff]
    %v611 = vld [vmem:[%s4 + $0x78] sm:$0xff]
    %v612 = vld [vmem:[%s4 + $0x80] sm:$0xff]
    %v613 = vld [vmem:[%s4 + $0x88] sm:$0xff]
    %v614 = vld [vmem:[%s4 + $0x90] sm:$0xff]
    %v615 = vld [vmem:[%s4 + $0x98] sm:$0xff]
    %v616 = vld [vmem:[%s4 + $0xa0] sm:$0xff]
    %v617 = vld [vmem:[%s4 + $0xa8] sm:$0xff]
    %v618 = vld [vmem:[%s4 + $0xb0] sm:$0xff]
    %v619 = vld [vmem:[%s4 + $0xb8] sm:$0xff]
    %v620 = vld [vmem:[%s4 + $0xc0] sm:$0xff]
    %v621 = vld [vmem:[%s4 + $0xc8] sm:$0xff]
    %v622 = vld [vmem:[%s4 + $0xd0] sm:$0xff]
    %v623 = vld [vmem:[%s4 + $0xd8] sm:$0xff]
    %v624 = vld [vmem:[%s4 + $0xe0] sm:$0xff]
    %v625 = vld [vmem:[%s4 + $0xe8] sm:$0xff]
    %v626 = vld [vmem:[%s4 + $0xf0] sm:$0xff]
    %v627 = vld [vmem:[%s4 + $0xf8] sm:$0xff]
    %v628 = vld [vmem:[%s4 + $0x100] sm:$0xff]
    %v629 = vld [vmem:[%s4 + $0x108] sm:$0xff]
    %v630 = vld [vmem:[%s4 + $0x110] sm:$0xff]
    %v631 = vld [vmem:[%s4 + $0x118] sm:$0xff]
    %v632 = vld [vmem:[%s4 + $0x120] sm:$0xff]
    %v633 = vld [vmem:[%s4 + $0x128] sm:$0xff]
    %v634 = vld [vmem:[%s4 + $0x130] sm:$0xff]
    %v635 = vld [vmem:[%s4 + $0x138] sm:$0xff]
    %v637 = vsel %vm436, %v592, 0
    %v640 = vsel %vm436, %v595, 0
    %642 = vmatprep.subr.mxu0 0.0
    %643 = vmatpush1.msra.mxu0 %v611
    %644 = vmatprep.subr.mxu0 0.0
    %645 = vmatpush1.msra.mxu0 %v610
    %646 = vmatprep.subr.mxu0 0.0
    %647 = vmatpush1.msra.mxu0 %v609
    %648 = vmatprep.subr.mxu0 0.0
    %649 = vmatpush1.msra.mxu0 %v608
    %650 = vmatprep.subr.mxu0 0.0
    %651 = vmatpush1.msra.mxu0 %v607
    %652 = vmatprep.subr.mxu0 0.0
    %653 = vmatpush1.msra.mxu0 %v606
    %654 = vmatprep.subr.mxu0 0.0
    %655 = vmatpush1.msra.mxu0 %v605
    %656 = vmatprep.subr.mxu0 0.0
    %657 = vmatpush1.msra.mxu0 %v604
    %658 = vmatprep.subr.mxu0 0.0
    %659 = vmatpush1.msra.mxu0 %v603
    %660 = vmatprep.subr.mxu0 0.0
    %661 = vmatpush1.msra.mxu0 %v602
    %662 = vmatprep.subr.mxu0 0.0
    %663 = vmatpush1.msra.mxu0 %v601
    %664 = vmatprep.subr.mxu0 0.0
    %665 = vmatpush1.msra.mxu0 %v600
    %666 = vmatprep.subr.mxu0 0.0
    %667 = vmatpush1.msra.mxu0 %v599
    %668 = vmatprep.subr.mxu0 0.0
    %669 = vmatpush1.msra.mxu0 %v598
    %670 = vmatprep.subr.mxu0 0.0
    %671 = vmatpush1.msra.mxu0 %v597
    %672 = vmatprep.subr.mxu0 0.0
    %673 = vmatpush1.msra.mxu0 %v596
    %674 = vmatprep.subr.mxu0 0.0
    %675 = vmatpush2.msra.mxu0 %v627
    %676 = vmatprep.subr.mxu0 0.0
    %677 = vmatpush2.msra.mxu0 %v626
    %678 = vmatprep.subr.mxu0 0.0
    %679 = vmatpush2.msra.mxu0 %v625
    %680 = vmatprep.subr.mxu0 0.0
    %681 = vmatpush2.msra.mxu0 %v624
    %682 = vmatprep.subr.mxu0 0.0
    %683 = vmatpush2.msra.mxu0 %v623
    %684 = vmatprep.subr.mxu0 0.0
    %685 = vmatpush2.msra.mxu0 %v622
    %686 = vmatprep.subr.mxu0 0.0
    %687 = vmatpush2.msra.mxu0 %v621
    %688 = vmatprep.subr.mxu0 0.0
    %689 = vmatpush2.msra.mxu0 %v620
    %690 = vmatprep.subr.mxu0 0.0
    %691 = vmatpush2.msra.mxu0 %v619
    %692 = vmatprep.subr.mxu0 0.0
    %693 = vmatpush2.msra.mxu0 %v618
    %694 = vmatprep.subr.mxu0 0.0
    %695 = vmatpush2.msra.mxu0 %v617
    %696 = vmatprep.subr.mxu0 0.0
    %697 = vmatpush2.msra.mxu0 %v616
    %698 = vmatprep.subr.mxu0 0.0
    %699 = vmatpush2.msra.mxu0 %v615
    %700 = vmatprep.subr.mxu0 0.0
    %701 = vmatpush2.msra.mxu0 %v614
    %702 = vmatprep.subr.mxu0 0.0
    %703 = vmatpush2.msra.mxu0 %v613
    %704 = vmatprep.subr.mxu0 0.0
    %705 = vmatpush2.msra.mxu0 %v612
    %706 = vmatprep.mubr.f32.mxu0 %v591
    %707 = vmatmul.mubr.f32.gmra.mxu0 %v590
    %v708 = vpop.f32.mrf.mxu0
    %v709 = vadd.f32 0.0, %v708
    %v710 = vpop.f32.mrf.mxu0
    %711 = vmatprep.mubr.f32.mxu0 %v594
    %712 = vmatmul.mubr.f32.gmra.mxu0 %v593
    %v713 = vpop.f32.mrf.mxu0
    %v714 = vadd.f32 0.0, %v713
    %v715 = vpop.f32.mrf.mxu0
    %716 = vdwg.mxu0
    %717 = vmatprep.subr.mxu0 0.0
    %718 = vmatpush1.msra.mxu0 0.0
    %719 = vmatprep.subr.mxu0 0.0
    %720 = vmatpush1.msra.mxu0 0.0
    %721 = vmatprep.subr.mxu0 0.0
    %722 = vmatpush1.msra.mxu0 0.0
    %723 = vmatprep.subr.mxu0 0.0
    %724 = vmatpush1.msra.mxu0 0.0
    %725 = vmatprep.subr.mxu0 0.0
    %726 = vmatpush1.msra.mxu0 0.0
    %727 = vmatprep.subr.mxu0 0.0
    %728 = vmatpush1.msra.mxu0 0.0
    %729 = vmatprep.subr.mxu0 0.0
    %730 = vmatpush1.msra.mxu0 0.0
    %731 = vmatprep.subr.mxu0 0.0
    %732 = vmatpush1.msra.mxu0 0.0
    %733 = vmatprep.subr.mxu0 0.0
    %734 = vmatpush1.msra.mxu0 %v635
    %735 = vmatprep.subr.mxu0 0.0
    %736 = vmatpush1.msra.mxu0 %v634
    %737 = vmatprep.subr.mxu0 0.0
    %738 = vmatpush1.msra.mxu0 %v633
    %739 = vmatprep.subr.mxu0 0.0
    %740 = vmatpush1.msra.mxu0 %v632
    %741 = vmatprep.subr.mxu0 0.0
    %742 = vmatpush1.msra.mxu0 %v631
    %743 = vmatprep.subr.mxu0 0.0
    %744 = vmatpush1.msra.mxu0 %v630
    %745 = vmatprep.subr.mxu0 0.0
    %746 = vmatpush1.msra.mxu0 %v629
    %747 = vmatprep.subr.mxu0 0.0
    %748 = vmatpush1.msra.mxu0 %v628
    %749 = vmatprep.subr.mxu0 0.0
    %750 = vmatpush2.msra.mxu0 0.0
    %751 = vmatprep.subr.mxu0 0.0
    %752 = vmatpush2.msra.mxu0 0.0
    %753 = vmatprep.subr.mxu0 0.0
    %754 = vmatpush2.msra.mxu0 0.0
    %755 = vmatprep.subr.mxu0 0.0
    %756 = vmatpush2.msra.mxu0 0.0
    %757 = vmatprep.subr.mxu0 0.0
    %758 = vmatpush2.msra.mxu0 0.0
    %759 = vmatprep.subr.mxu0 0.0
    %760 = vmatpush2.msra.mxu0 0.0
    %761 = vmatprep.subr.mxu0 0.0
    %762 = vmatpush2.msra.mxu0 0.0
    %763 = vmatprep.subr.mxu0 0.0
    %764 = vmatpush2.msra.mxu0 0.0
    %765 = vmatprep.subr.mxu0 0.0
    %766 = vmatpush2.msra.mxu0 0.0
    %767 = vmatprep.subr.mxu0 0.0
    %768 = vmatpush2.msra.mxu0 0.0
    %769 = vmatprep.subr.mxu0 0.0
    %770 = vmatpush2.msra.mxu0 0.0
    %771 = vmatprep.subr.mxu0 0.0
    %772 = vmatpush2.msra.mxu0 0.0
    %773 = vmatprep.subr.mxu0 0.0
    %774 = vmatpush2.msra.mxu0 0.0
    %775 = vmatprep.subr.mxu0 0.0
    %776 = vmatpush2.msra.mxu0 0.0
    %777 = vmatprep.subr.mxu0 0.0
    %778 = vmatpush2.msra.mxu0 0.0
    %779 = vmatprep.subr.mxu0 0.0
    %780 = vmatpush2.msra.mxu0 0.0
    %781 = vmatprep.mubr.f32.mxu0 0.0
    %782 = vmatmul.mubr.f32.gmra.mxu0 %v637
    %v783 = vpop.f32.mrf.mxu0
    %v784 = vadd.f32 %v709, %v783
    %v785 = vpop.f32.mrf.mxu0
    %786 = vmatprep.mubr.f32.mxu0 0.0
    %787 = vmatmul.mubr.f32.gmra.mxu0 %v640
    %v788 = vpop.f32.mrf.mxu0
    %v789 = vadd.f32 %v714, %v788
    %v790 = vpop.f32.mrf.mxu0
    %791 = vdwg.mxu0
    %v792 = vld [vmem:[%s5] sm:$0x1]
    %v794 = vlaneseq
    %v795 = vshrl.u32 %v794, 7
    %v796 = vsub.s32 0, %v795
    %v797 = vrot.slane %v792, %v796
    %v799 = vmul.f32 %v784, %v797
    %v800 = vmul.f32 %v789, %v797
    %v801 = vld [vmem:[%s6] sm:$0x1]
    %v803 = vlaneseq
    %v804 = vshrl.u32 %v803, 7
    %v805 = vsub.s32 0, %v804
    %v806 = vrot.slane %v801, %v805
    %v808 = vadd.f32 %v799, %v806
    %v809 = vadd.f32 %v800, %v806
    %v810 = vmax.f32 %v808, 0.0
    %v811 = vmax.f32 %v809, 0.0
    %812 = vst [vmem:[#allocation6] sm:$0xff] %v810
    %813 = vst [vmem:[#allocation6 + $0x8] sm:$0xf] %v811
    %v814 = vld [vmem:[#allocation6] sm:$0x7]
    %v815 = vld [vmem:[#allocation6 + $0x3] sm:$0x7]
    %v816 = vmax.f32 %v814, %v815
    %817 = vst [vmem:[#allocation7] sm:$0x7] %v816
    %v818 = vld [vmem:[#allocation6 + $0x6] sm:$0x7]
    %v819 = vld [vmem:[#allocation6 + $0x9] sm:$0x7]
    %v820 = vmax.f32 %v818, %v819
    %821 = vst [vmem:[#allocation7 + $0x3] sm:$0x7] %v820
    %v822 = vld [vmem:[#allocation7] sm:$0x1]
    %823 = vst [vmem:[#allocation8] sm:$0x1] %v822
    %v824 = vld [vmem:[#allocation7 + $0x1] sm:$0x1]
    %825 = vst [vmem:[#allocation8 + $0x2] sm:$0x1] %v824
    %v826 = vld [vmem:[#allocation7 + $0x2] sm:$0x1]
    %827 = vst [vmem:[#allocation8 + $0x4] sm:$0x1] %v826
    %v828 = vld [vmem:[#allocation7 + $0x3] sm:$0x1]
    %829 = vst [vmem:[#allocation8 + $0x1] sm:$0x1] %v828
    %v830 = vld [vmem:[#allocation7 + $0x4] sm:$0x1]
    %831 = vst [vmem:[#allocation8 + $0x3] sm:$0x1] %v830
    %v832 = vld [vmem:[#allocation7 + $0x5] sm:$0x1]
    %833 = vst [vmem:[#allocation8 + $0x5] sm:$0x1] %v832
    %v834 = vld [vmem:[#allocation8] sm:$0x3f]
    %v835 = vld [vmem:[%s7] sm:$0xff]
    %v836 = vld [vmem:[%s7 + $0x8] sm:$0xff]
    %v837 = vld [vmem:[%s7 + $0x10] sm:$0xff]
    %v838 = vld [vmem:[%s7 + $0x18] sm:$0xff]
    %v839 = vld [vmem:[%s7 + $0x20] sm:$0xff]
    %v840 = vld [vmem:[%s7 + $0x28] sm:$0xff]
    %v841 = vld [vmem:[%s7 + $0x30] sm:$0xff]
    %v842 = vld [vmem:[%s7 + $0x38] sm:$0xff]
    %v843 = vld [vmem:[%s7 + $0x40] sm:$0xff]
    %v844 = vld [vmem:[%s7 + $0x48] sm:$0xff]
    %v845 = vld [vmem:[%s7 + $0x50] sm:$0xff]
    %v846 = vld [vmem:[%s7 + $0x58] sm:$0xff]
    %v847 = vld [vmem:[%s7 + $0x60] sm:$0xff]
    %v848 = vld [vmem:[%s7 + $0x68] sm:$0xff]
    %v849 = vld [vmem:[%s7 + $0x70] sm:$0xff]
    %v850 = vld [vmem:[%s7 + $0x78] sm:$0xff]
    %v851 = vld [vmem:[%s7 + $0x80] sm:$0xff]
    %v852 = vld [vmem:[%s7 + $0x88] sm:$0xff]
    %v853 = vld [vmem:[%s7 + $0x90] sm:$0xff]
    %v854 = vld [vmem:[%s7 + $0x98] sm:$0xff]
    %v855 = vld [vmem:[%s7 + $0xa0] sm:$0xff]
    %v856 = vld [vmem:[%s7 + $0xa8] sm:$0xff]
    %v857 = vld [vmem:[%s7 + $0xb0] sm:$0xff]
    %v858 = vld [vmem:[%s7 + $0xb8] sm:$0xff]
    %v859 = vld [vmem:[%s7 + $0xc0] sm:$0xff]
    %v860 = vld [vmem:[%s7 + $0xc8] sm:$0xff]
    %v861 = vld [vmem:[%s7 + $0xd0] sm:$0xff]
    %v862 = vld [vmem:[%s7 + $0xd8] sm:$0xff]
    %v863 = vld [vmem:[%s7 + $0xe0] sm:$0xff]
    %v864 = vld [vmem:[%s7 + $0xe8] sm:$0xff]
    %v865 = vld [vmem:[%s7 + $0xf0] sm:$0xff]
    %v866 = vld [vmem:[%s7 + $0xf8] sm:$0xff]
    %v867 = vld [vmem:[%s7 + $0x100] sm:$0xff]
    %v868 = vld [vmem:[%s7 + $0x108] sm:$0xff]
    %v869 = vld [vmem:[%s7 + $0x110] sm:$0xff]
    %v870 = vld [vmem:[%s7 + $0x118] sm:$0xff]
    %v871 = vld [vmem:[%s7 + $0x120] sm:$0xff]
    %v872 = vld [vmem:[%s7 + $0x128] sm:$0xff]
    %v873 = vld [vmem:[%s7 + $0x130] sm:$0xff]
    %v874 = vld [vmem:[%s7 + $0x138] sm:$0xff]
    %v875 = vld [vmem:[%s7 + $0x140] sm:$0xff]
    %v876 = vld [vmem:[%s7 + $0x148] sm:$0xff]
    %v877 = vld [vmem:[%s7 + $0x150] sm:$0xff]
    %v878 = vld [vmem:[%s7 + $0x158] sm:$0xff]
    %v879 = vld [vmem:[%s7 + $0x160] sm:$0xff]
    %v880 = vld [vmem:[%s7 + $0x168] sm:$0xff]
    %v881 = vld [vmem:[%s7 + $0x170] sm:$0xff]
    %v882 = vld [vmem:[%s7 + $0x178] sm:$0xff]
    %v883 = vld [vmem:[%s8] sm:$0x1]
    %v885 = vlaneseq
    %v886 = vshrl.u32 %v885, 7
    %v887 = vsub.s32 0, %v886
    %v888 = vrot.slane %v883, %v887
    %v891 = vcombine.high %v834, %v834
    %v893 = vunpack.c.l.s4 1983009808
    %v894 = vunpack.c.0.s8 %v893
    %v895 = vlaneseq
    %v896 = vshrl.u32 %v895, 7
    %v897 = vsub.s32 %v894, %v896
    %v898 = vrot.slane %v834, %v897
    %v900 = vunpack.c.l.s4 1983009808
    %v901 = vunpack.c.0.s8 %v900
    %v902 = vlaneseq
    %v903 = vshrl.u32 %v902, 7
    %v904 = vsub.s32 %v901, %v903
    %v905 = vrot.slane %v891, %v904
    %v906 = vcombine.high %v898, %v898
    %910 = vmatprep.subr.mxu0 0.0
    %911 = vmatpush1.msra.mxu0 %v850
    %912 = vmatprep.subr.mxu0 0.0
    %913 = vmatpush1.msra.mxu0 %v849
    %914 = vmatprep.subr.mxu0 0.0
    %915 = vmatpush1.msra.mxu0 %v848
    %916 = vmatprep.subr.mxu0 0.0
    %917 = vmatpush1.msra.mxu0 %v847
    %918 = vmatprep.subr.mxu0 0.0
    %919 = vmatpush1.msra.mxu0 %v846
    %920 = vmatprep.subr.mxu0 0.0
    %921 = vmatpush1.msra.mxu0 %v845
    %922 = vmatprep.subr.mxu0 0.0
    %923 = vmatpush1.msra.mxu0 %v844
    %924 = vmatprep.subr.mxu0 0.0
    %925 = vmatpush1.msra.mxu0 %v843
    %926 = vmatprep.subr.mxu0 0.0
    %927 = vmatpush1.msra.mxu0 %v842
    %928 = vmatprep.subr.mxu0 0.0
    %929 = vmatpush1.msra.mxu0 %v841
    %930 = vmatprep.subr.mxu0 0.0
    %931 = vmatpush1.msra.mxu0 %v840
    %932 = vmatprep.subr.mxu0 0.0
    %933 = vmatpush1.msra.mxu0 %v839
    %934 = vmatprep.subr.mxu0 0.0
    %935 = vmatpush1.msra.mxu0 %v838
    %936 = vmatprep.subr.mxu0 0.0
    %937 = vmatpush1.msra.mxu0 %v837
    %938 = vmatprep.subr.mxu0 0.0
    %939 = vmatpush1.msra.mxu0 %v836
    %940 = vmatprep.subr.mxu0 0.0
    %941 = vmatpush1.msra.mxu0 %v835
    %942 = vmatprep.subr.mxu0 0.0
    %943 = vmatpush2.msra.mxu0 %v866
    %944 = vmatprep.subr.mxu0 0.0
    %945 = vmatpush2.msra.mxu0 %v865
    %946 = vmatprep.subr.mxu0 0.0
    %947 = vmatpush2.msra.mxu0 %v864
    %948 = vmatprep.subr.mxu0 0.0
    %949 = vmatpush2.msra.mxu0 %v863
    %950 = vmatprep.subr.mxu0 0.0
    %951 = vmatpush2.msra.mxu0 %v862
    %952 = vmatprep.subr.mxu0 0.0
    %953 = vmatpush2.msra.mxu0 %v861
    %954 = vmatprep.subr.mxu0 0.0
    %955 = vmatpush2.msra.mxu0 %v860
    %956 = vmatprep.subr.mxu0 0.0
    %957 = vmatpush2.msra.mxu0 %v859
    %958 = vmatprep.subr.mxu0 0.0
    %959 = vmatpush2.msra.mxu0 %v858
    %960 = vmatprep.subr.mxu0 0.0
    %961 = vmatpush2.msra.mxu0 %v857
    %962 = vmatprep.subr.mxu0 0.0
    %963 = vmatpush2.msra.mxu0 %v856
    %964 = vmatprep.subr.mxu0 0.0
    %965 = vmatpush2.msra.mxu0 %v855
    %966 = vmatprep.subr.mxu0 0.0
    %967 = vmatpush2.msra.mxu0 %v854
    %968 = vmatprep.subr.mxu0 0.0
    %969 = vmatpush2.msra.mxu0 %v853
    %970 = vmatprep.subr.mxu0 0.0
    %971 = vmatpush2.msra.mxu0 %v852
    %972 = vmatprep.subr.mxu0 0.0
    %973 = vmatpush2.msra.mxu0 %v851
    %974 = vmatprep.mubr.f32.mxu0 %v906
    %975 = vmatmul.mubr.f32.gmra.mxu0 %v898
    %v976 = vpop.f32.mrf.mxu0
    %v977 = vadd.f32 %v888, %v976
    %v978 = vpop.f32.mrf.mxu0
    %979 = vdwg.mxu0
    %980 = vmatprep.subr.mxu0 0.0
    %981 = vmatpush1.msra.mxu0 %v882
    %982 = vmatprep.subr.mxu0 0.0
    %983 = vmatpush1.msra.mxu0 %v881
    %984 = vmatprep.subr.mxu0 0.0
    %985 = vmatpush1.msra.mxu0 %v880
    %986 = vmatprep.subr.mxu0 0.0
    %987 = vmatpush1.msra.mxu0 %v879
    %988 = vmatprep.subr.mxu0 0.0
    %989 = vmatpush1.msra.mxu0 %v878
    %990 = vmatprep.subr.mxu0 0.0
    %991 = vmatpush1.msra.mxu0 %v877
    %992 = vmatprep.subr.mxu0 0.0
    %993 = vmatpush1.msra.mxu0 %v876
    %994 = vmatprep.subr.mxu0 0.0
    %995 = vmatpush1.msra.mxu0 %v875
    %996 = vmatprep.subr.mxu0 0.0
    %997 = vmatpush1.msra.mxu0 %v874
    %998 = vmatprep.subr.mxu0 0.0
    %999 = vmatpush1.msra.mxu0 %v873
    %1000 = vmatprep.subr.mxu0 0.0
    %1001 = vmatpush1.msra.mxu0 %v872
    %1002 = vmatprep.subr.mxu0 0.0
    %1003 = vmatpush1.msra.mxu0 %v871
    %1004 = vmatprep.subr.mxu0 0.0
    %1005 = vmatpush1.msra.mxu0 %v870
    %1006 = vmatprep.subr.mxu0 0.0
    %1007 = vmatpush1.msra.mxu0 %v869
    %1008 = vmatprep.subr.mxu0 0.0
    %1009 = vmatpush1.msra.mxu0 %v868
    %1010 = vmatprep.subr.mxu0 0.0
    %1011 = vmatpush1.msra.mxu0 %v867
    %1012 = vmatprep.subr.mxu0 0.0
    %1013 = vmatpush2.msra.mxu0 0.0
    %1014 = vmatprep.subr.mxu0 0.0
    %1015 = vmatpush2.msra.mxu0 0.0
    %1016 = vmatprep.subr.mxu0 0.0
    %1017 = vmatpush2.msra.mxu0 0.0
    %1018 = vmatprep.subr.mxu0 0.0
    %1019 = vmatpush2.msra.mxu0 0.0
    %1020 = vmatprep.subr.mxu0 0.0
    %1021 = vmatpush2.msra.mxu0 0.0
    %1022 = vmatprep.subr.mxu0 0.0
    %1023 = vmatpush2.msra.mxu0 0.0
    %1024 = vmatprep.subr.mxu0 0.0
    %1025 = vmatpush2.msra.mxu0 0.0
    %1026 = vmatprep.subr.mxu0 0.0
    %1027 = vmatpush2.msra.mxu0 0.0
    %1028 = vmatprep.subr.mxu0 0.0
    %1029 = vmatpush2.msra.mxu0 0.0
    %1030 = vmatprep.subr.mxu0 0.0
    %1031 = vmatpush2.msra.mxu0 0.0
    %1032 = vmatprep.subr.mxu0 0.0
    %1033 = vmatpush2.msra.mxu0 0.0
    %1034 = vmatprep.subr.mxu0 0.0
    %1035 = vmatpush2.msra.mxu0 0.0
    %1036 = vmatprep.subr.mxu0 0.0
    %1037 = vmatpush2.msra.mxu0 0.0
    %1038 = vmatprep.subr.mxu0 0.0
    %1039 = vmatpush2.msra.mxu0 0.0
    %1040 = vmatprep.subr.mxu0 0.0
    %1041 = vmatpush2.msra.mxu0 0.0
    %1042 = vmatprep.subr.mxu0 0.0
    %1043 = vmatpush2.msra.mxu0 0.0
    %1044 = vmatprep.mubr.f32.mxu0 0.0
    %1045 = vmatmul.mubr.f32.gmra.mxu0 %v905
    %v1046 = vpop.f32.mrf.mxu0
    %v1047 = vadd.f32 %v977, %v1046
    %v1048 = vpop.f32.mrf.mxu0
    %1049 = vdwg.mxu0
    %v1050 = vmax.f32 %v1047, 0.0
    %v1051 = vld [vmem:[%s9] sm:$0xff]
    %v1052 = vld [vmem:[%s9 + $0x8] sm:$0xff]
    %v1053 = vld [vmem:[%s9 + $0x10] sm:$0xff]
    %v1054 = vld [vmem:[%s9 + $0x18] sm:$0xff]
    %v1055 = vld [vmem:[%s9 + $0x20] sm:$0xff]
    %v1056 = vld [vmem:[%s9 + $0x28] sm:$0xff]
    %v1057 = vld [vmem:[%s9 + $0x30] sm:$0xff]
    %v1058 = vld [vmem:[%s9 + $0x38] sm:$0xff]
    %v1059 = vld [vmem:[%s10] sm:$0x1]
    %v1061 = vlaneseq
    %v1062 = vshrl.u32 %v1061, 7
    %v1063 = vsub.s32 0, %v1062
    %v1064 = vrot.slane %v1059, %v1063
    %v1067 = vsel %vm436, %v1050, 0
    %1069 = vmatprep.subr.mxu0 0.0
    %1070 = vmatpush1.msra.mxu0 0.0
    %1071 = vmatprep.subr.mxu0 0.0
    %1072 = vmatpush1.msra.mxu0 0.0
    %1073 = vmatprep.subr.mxu0 0.0
    %1074 = vmatpush1.msra.mxu0 0.0
    %1075 = vmatprep.subr.mxu0 0.0
    %1076 = vmatpush1.msra.mxu0 0.0
    %1077 = vmatprep.subr.mxu0 0.0
    %1078 = vmatpush1.msra.mxu0 0.0
    %1079 = vmatprep.subr.mxu0 0.0
    %1080 = vmatpush1.msra.mxu0 0.0
    %1081 = vmatprep.subr.mxu0 0.0
    %1082 = vmatpush1.msra.mxu0 0.0
    %1083 = vmatprep.subr.mxu0 0.0
    %1084 = vmatpush1.msra.mxu0 0.0
    %1085 = vmatprep.subr.mxu0 0.0
    %1086 = vmatpush1.msra.mxu0 %v1058
    %1087 = vmatprep.subr.mxu0 0.0
    %1088 = vmatpush1.msra.mxu0 %v1057
    %1089 = vmatprep.subr.mxu0 0.0
    %1090 = vmatpush1.msra.mxu0 %v1056
    %1091 = vmatprep.subr.mxu0 0.0
    %1092 = vmatpush1.msra.mxu0 %v1055
    %1093 = vmatprep.subr.mxu0 0.0
    %1094 = vmatpush1.msra.mxu0 %v1054
    %1095 = vmatprep.subr.mxu0 0.0
    %1096 = vmatpush1.msra.mxu0 %v1053
    %1097 = vmatprep.subr.mxu0 0.0
    %1098 = vmatpush1.msra.mxu0 %v1052
    %1099 = vmatprep.subr.mxu0 0.0
    %1100 = vmatpush1.msra.mxu0 %v1051
    %1101 = vmatprep.subr.mxu0 0.0
    %1102 = vmatpush2.msra.mxu0 0.0
    %1103 = vmatprep.subr.mxu0 0.0
    %1104 = vmatpush2.msra.mxu0 0.0
    %1105 = vmatprep.subr.mxu0 0.0
    %1106 = vmatpush2.msra.mxu0 0.0
    %1107 = vmatprep.subr.mxu0 0.0
    %1108 = vmatpush2.msra.mxu0 0.0
    %1109 = vmatprep.subr.mxu0 0.0
    %1110 = vmatpush2.msra.mxu0 0.0
    %1111 = vmatprep.subr.mxu0 0.0
    %1112 = vmatpush2.msra.mxu0 0.0
    %1113 = vmatprep.subr.mxu0 0.0
    %1114 = vmatpush2.msra.mxu0 0.0
    %1115 = vmatprep.subr.mxu0 0.0
    %1116 = vmatpush2.msra.mxu0 0.0
    %1117 = vmatprep.subr.mxu0 0.0
    %1118 = vmatpush2.msra.mxu0 0.0
    %1119 = vmatprep.subr.mxu0 0.0
    %1120 = vmatpush2.msra.mxu0 0.0
    %1121 = vmatprep.subr.mxu0 0.0
    %1122 = vmatpush2.msra.mxu0 0.0
    %1123 = vmatprep.subr.mxu0 0.0
    %1124 = vmatpush2.msra.mxu0 0.0
    %1125 = vmatprep.subr.mxu0 0.0
    %1126 = vmatpush2.msra.mxu0 0.0
    %1127 = vmatprep.subr.mxu0 0.0
    %1128 = vmatpush2.msra.mxu0 0.0
    %1129 = vmatprep.subr.mxu0 0.0
    %1130 = vmatpush2.msra.mxu0 0.0
    %1131 = vmatprep.subr.mxu0 0.0
    %1132 = vmatpush2.msra.mxu0 0.0
    %1133 = vmatprep.mubr.f32.mxu0 0.0
    %1134 = vmatmul.mubr.f32.gmra.mxu0 %v1067
    %v1135 = vpop.f32.mrf.mxu0
    %v1136 = vadd.f32 %v1064, %v1135
    %v1137 = vpop.f32.mrf.mxu0
    %1138 = vdwg.mxu0
    %v1139 = vmax.f32 %v1136, 0.0
    %v1140 = vld [vmem:[%s11] sm:$0xff]
    %v1141 = vld [vmem:[%s11 + $0x8] sm:$0xff]
    %v1142 = vld [vmem:[%s11 + $0x10] sm:$0xff]
    %v1143 = vld [vmem:[%s11 + $0x18] sm:$0xff]
    %v1144 = vld [vmem:[%s12] sm:$0x1]
    %v1146 = vlaneseq
    %v1147 = vshrl.u32 %v1146, 7
    %v1148 = vsub.s32 0, %v1147
    %v1149 = vrot.slane %v1144, %v1148
    %vm1151 = vcmask 261120
    %v1153 = vsel %vm1151, %v1139, 0
    %1155 = vmatprep.subr.mxu0 0.0
    %1156 = vmatpush1.msra.mxu0 0.0
    %1157 = vmatprep.subr.mxu0 0.0
    %1158 = vmatpush1.msra.mxu0 0.0
    %1159 = vmatprep.subr.mxu0 0.0
    %1160 = vmatpush1.msra.mxu0 0.0
    %1161 = vmatprep.subr.mxu0 0.0
    %1162 = vmatpush1.msra.mxu0 0.0
    %1163 = vmatprep.subr.mxu0 0.0
    %1164 = vmatpush1.msra.mxu0 0.0
    %1165 = vmatprep.subr.mxu0 0.0
    %1166 = vmatpush1.msra.mxu0 0.0
    %1167 = vmatprep.subr.mxu0 0.0
    %1168 = vmatpush1.msra.mxu0 0.0
    %1169 = vmatprep.subr.mxu0 0.0
    %1170 = vmatpush1.msra.mxu0 0.0
    %1171 = vmatprep.subr.mxu0 0.0
    %1172 = vmatpush1.msra.mxu0 0.0
    %1173 = vmatprep.subr.mxu0 0.0
    %1174 = vmatpush1.msra.mxu0 0.0
    %1175 = vmatprep.subr.mxu0 0.0
    %1176 = vmatpush1.msra.mxu0 0.0
    %1177 = vmatprep.subr.mxu0 0.0
    %1178 = vmatpush1.msra.mxu0 0.0
    %1179 = vmatprep.subr.mxu0 0.0
    %1180 = vmatpush1.msra.mxu0 %v1143
    %1181 = vmatprep.subr.mxu0 0.0
    %1182 = vmatpush1.msra.mxu0 %v1142
    %1183 = vmatprep.subr.mxu0 0.0
    %1184 = vmatpush1.msra.mxu0 %v1141
    %1185 = vmatprep.subr.mxu0 0.0
    %1186 = vmatpush1.msra.mxu0 %v1140
    %1187 = vmatprep.subr.mxu0 0.0
    %1188 = vmatpush2.msra.mxu0 0.0
    %1189 = vmatprep.subr.mxu0 0.0
    %1190 = vmatpush2.msra.mxu0 0.0
    %1191 = vmatprep.subr.mxu0 0.0
    %1192 = vmatpush2.msra.mxu0 0.0
    %1193 = vmatprep.subr.mxu0 0.0
    %1194 = vmatpush2.msra.mxu0 0.0
    %1195 = vmatprep.subr.mxu0 0.0
    %1196 = vmatpush2.msra.mxu0 0.0
    %1197 = vmatprep.subr.mxu0 0.0
    %1198 = vmatpush2.msra.mxu0 0.0
    %1199 = vmatprep.subr.mxu0 0.0
    %1200 = vmatpush2.msra.mxu0 0.0
    %1201 = vmatprep.subr.mxu0 0.0
    %1202 = vmatpush2.msra.mxu0 0.0
    %1203 = vmatprep.subr.mxu0 0.0
    %1204 = vmatpush2.msra.mxu0 0.0
    %1205 = vmatprep.subr.mxu0 0.0
    %1206 = vmatpush2.msra.mxu0 0.0
    %1207 = vmatprep.subr.mxu0 0.0
    %1208 = vmatpush2.msra.mxu0 0.0
    %1209 = vmatprep.subr.mxu0 0.0
    %1210 = vmatpush2.msra.mxu0 0.0
    %1211 = vmatprep.subr.mxu0 0.0
    %1212 = vmatpush2.msra.mxu0 0.0
    %1213 = vmatprep.subr.mxu0 0.0
    %1214 = vmatpush2.msra.mxu0 0.0
    %1215 = vmatprep.subr.mxu0 0.0
    %1216 = vmatpush2.msra.mxu0 0.0
    %1217 = vmatprep.subr.mxu0 0.0
    %1218 = vmatpush2.msra.mxu0 0.0
    %1219 = vmatprep.mubr.f32.mxu0 0.0
    %1220 = vmatmul.mubr.f32.gmra.mxu0 %v1153
    %v1221 = vpop.f32.mrf.mxu0
    %v1222 = vadd.f32 %v1149, %v1221
    %v1223 = vpop.f32.mrf.mxu0
    %1224 = vdwg.mxu0
    %vm1225 = vcmask 9216
    %v1226 = vsel %vm1225, %v1222, -inf
    %1227 = vmax.xlane.f32.xlu0 %v1226
    %v1228 = vpop.xlane.xlu0 %1227
    %v1229 = vsub.f32 %v1222, %v1228
    %v1230 = vmul.f32 %v1229, 1.442695
    %v1231 = vpow.pop %v1230
    %v1232 = vsel %vm1225, %v1231, 0.0
    %1233 = vadd.xlane.f32.xlu0 %v1232
    %v1234 = vpop.xlane.xlu0 %1233
    %v1235 = vlog2.pop %v1234
    %v1236 = vmul.f32 %v1235, 0.6931472
    %v1237 = vsub.f32 %v1229, %v1236
    %1238 = vst.msk [vmem:[#allocation9] sm:$0x3] %vm1225, %v1237
    // Predicated region
    $region54: #{cnn_forward.1} parent=1 // pred_check
      _
    $region55: #{cnn_forward.1} parent=1 // pred_check_branch
      %1240 = sbr.rel (0) target = $region57
    $region56: #{cnn_forward.1} parent=1 // pred_region
      %s1242 = ssub.s32 32, 32
      %1243 = vsyncadd [#allocation10], %s1242
      %s1245 = sshll.u32 [#allocation9], 4
      %s1246 = int_to_ptr.vmem [resolvable:$true] %s1245
      %1248 = dma.vmem_to_hbm [thread:$0]  %s1246, 32, %s13, [#allocation10]
    $region57: #{cnn_forward.1} parent=1 // pred_fallthru
      _
    // Predicated region
    $region58: #{cnn_forward.1} parent=1 // pred_check
      _
    $region59: #{cnn_forward.1} parent=1 // pred_check_branch
      %1250 = sbr.rel (0) target = $region61
    $region60: #{cnn_forward.1} parent=1 // pred_region
      %1251 = dma.done [#allocation10], 32
    $region61: #{cnn_forward.1} parent=1 // pred_fallthru
      _
    %1252 = vsyncpa [#allocation10], 1

</llo_original>
